<compile_context>
chip_gen: v7x
topology: tpu7x:2x2x1
jax: 0.10.0
libtpu: 0.0.40
codegen_flags: <defaults>
</compile_context>

<pallas_src>
import jax
import jax.numpy as jnp
from jax.experimental import pallas as pl
from jax.experimental.pallas import tpu as pltpu


def _channel_residual_kernel(x_ref, w0_ref, b0_ref, w1_ref, b1_ref, o_ref):
    # x_ref / o_ref : (B, CB, F)  f32
    # w*_ref        : (CB, F, F)  bf16
    # b*_ref        : (CB, 1, F)  f32
    cb = w0_ref.shape[0]

    x = x_ref[...]                                    # one whole-block load (B, CB, F)
    h0 = jnp.maximum(x, 0.0).astype(jnp.bfloat16)     # relu + MXU-input cast, one VPU pass

    for c in range(cb):  # static unroll over the channel block
        t = jnp.dot(h0[:, c, :], w0_ref[c],
                    preferred_element_type=jnp.float32)        # linear 0 (MXU, f32 accum)
        t = jnp.maximum(t + b0_ref[c], 0.0)                    # bias + relu
        # dropout(p=0.0) is the identity.
        # TODO(synk): training-mode dropout (p > 0) not implemented here.
        t = jnp.dot(t.astype(jnp.bfloat16), w1_ref[c],
                    preferred_element_type=jnp.float32)        # linear 1
        o_ref[:, c, :] = (x[:, c, :] + t + b1_ref[c]).astype(o_ref.dtype)  # residual


def _choose_channel_block(C, max_unroll=8):
    """Pick CB | C with (CB == C or CB % 8 == 0) so the second-minor block dim is
    legal, small enough to keep the static unroll modest, and leaving >= 2 grid
    steps when possible so v7x's two TensorCores both get work."""
    if C <= max_unroll:
        return C
    for cb in range(max_unroll, 7, -1):
        if cb % 8 == 0 and C % cb == 0:
            return cb
    return C  # fallback: whole channel axis in one grid step


def channel_residual_block(x, w0, b0, w1, b1, *, channel_block=None):
    """x: (B, C, F); w*: (C, F, F); b*: (C, 1, F) -> (B, C, F)."""
    B, C, F = x.shape
    cb = channel_block if channel_block is not None else _choose_channel_block(C)
    assert C % cb == 0, "channel_block must divide channel_dim"

    # Stream weights to the MXU in bf16 (halves the dominant HBM bytes); biases,
    # activations, accumulation and the residual stay f32.
    w0 = w0.astype(jnp.bfloat16)
    w1 = w1.astype(jnp.bfloat16)
    b0 = b0.astype(jnp.float32)
    b1 = b1.astype(jnp.float32)

    bytes_accessed = (
        2 * B * C * F * x.dtype.itemsize   # x in + out
        + 2 * C * F * F * 2                # W0, W1 (bf16)
        + 2 * C * F * 4                    # biases (f32)
    )
    cost = pl.CostEstimate(flops=4 * B * C * F * F, transcendentals=0,
                           bytes_accessed=bytes_accessed)

    return pl.pallas_call(
        _channel_residual_kernel,
        out_shape=jax.ShapeDtypeStruct((B, C, F), x.dtype),
        grid_spec=pltpu.PrefetchScalarGridSpec(
            num_scalar_prefetch=0,
            grid=(C // cb,),
            in_specs=[
                pl.BlockSpec((B, cb, F), lambda c: (0, c, 0)),   # x  (native layout)
                pl.BlockSpec((cb, F, F), lambda c: (c, 0, 0)),   # W0
                pl.BlockSpec((cb, 1, F), lambda c: (c, 0, 0)),   # b0
                pl.BlockSpec((cb, F, F), lambda c: (c, 0, 0)),   # W1
                pl.BlockSpec((cb, 1, F), lambda c: (c, 0, 0)),   # b1
            ],
            out_specs=pl.BlockSpec((B, cb, F), lambda c: (0, c, 0)),
        ),
        compiler_params=pltpu.CompilerParams(
            dimension_semantics=("parallel",),        # channel blocks are independent
            vmem_limit_bytes=48 * 1024 * 1024,        # ample headroom even on v7x (64 MiB)
        ),
        cost_estimate=cost,
    )(x, w0, b0, w1, b1)


def _reference(x, w0, b0, w1, b1):
    """Plain-JAX f32 reference mirroring the PyTorch forward."""
    h = jax.nn.relu(x)
    h = jnp.einsum("bci,cio->bco", h, w0) + jnp.transpose(b0, (1, 0, 2))
    h = jax.nn.relu(h)
    h = jnp.einsum("bci,cio->bco", h, w1) + jnp.transpose(b1, (1, 0, 2))
    return x + h


if __name__ == "__main__":
    # B multiple of 8 (fills sublanes); F multiple of 128 (lane-dense loads/stores);
    # C // CB == 2 grid steps so both v7x TensorCores get work.
    B, C, F = 8, 16, 128

    key = jax.random.PRNGKey(0)
    kx, kw0, kb0, kw1, kb1 = jax.random.split(key, 5)

    x = jax.random.normal(kx, (B, C, F), dtype=jnp.float32)

    # Layer 0: standard-ish init (deterministic).
    bound0 = 1.0 / jnp.sqrt(F)
    w0 = jax.random.uniform(kw0, (C, F, F), jnp.float32, -bound0, bound0)
    b0 = jax.random.uniform(kb0, (C, 1, F), jnp.float32, -bound0, bound0)
    # Layer 1: zero_initialization=True -> uniform(-0.001, 0.001).
    w1 = jax.random.uniform(kw1, (C, F, F), jnp.float32, -0.001, 0.001)
    b1 = jax.random.uniform(kb1, (C, 1, F), jnp.float32, -0.001, 0.001)

    out = channel_residual_block(x, w0, b0, w1, b1)
    out = jax.block_until_ready(out)

    ref = _reference(x, w0, b0, w1, b1)
    assert out.shape == (B, C, F)
    # bf16 weight streaming -> bf16-appropriate tolerance vs the f32 reference.
    assert jnp.allclose(out, ref, atol=1e-2, rtol=1e-2), "mismatch vs reference"

    print("KERNEL_OK")
</pallas_src>

<mosaic_0001>
module attributes {stable_mosaic.version = 11 : i64} {
  func.func @_channel_residual_kernel(%arg0: i32, %arg1: memref<8x8x128xf32, #tpu.memory_space<vmem>>, %arg2: memref<8x128x128xbf16, #tpu.memory_space<vmem>>, %arg3: memref<8x1x128xf32, #tpu.memory_space<vmem>>, %arg4: memref<8x128x128xbf16, #tpu.memory_space<vmem>>, %arg5: memref<8x1x128xf32, #tpu.memory_space<vmem>>, %arg6: memref<8x8x128xf32, #tpu.memory_space<vmem>>) attributes {dimension_semantics = [#tpu.dimension_semantics<parallel>], iteration_bounds = array<i64: 2>, scalar_prefetch = 0 : i64, scratch_operands = 0 : i64, tpu.core_type = #tpu.core_type<tc>, window_params = [{transform_indices = @transform_0, window_bounds = array<i64: 8, 8, 128>}, {transform_indices = @transform_1, window_bounds = array<i64: 8, 128, 128>}, {transform_indices = @transform_2, window_bounds = array<i64: 8, 1, 128>}, {transform_indices = @transform_3, window_bounds = array<i64: 8, 128, 128>}, {transform_indices = @transform_4, window_bounds = array<i64: 8, 1, 128>}, {transform_indices = @transform_5, window_bounds = array<i64: 8, 8, 128>}]} {
    %c0 = arith.constant 0 : index
    %c0_0 = arith.constant 0 : index
    %c0_1 = arith.constant 0 : index
    %0 = vector.load %arg1[%c0, %c0_0, %c0_1] : memref<8x8x128xf32, #tpu.memory_space<vmem>>, vector<8x8x128xf32>
    %cst = arith.constant 0.000000e+00 : f32
    %1 = vector.broadcast %cst : f32 to vector<8x8x128xf32>
    %2 = arith.maximumf %0, %1 : vector<8x8x128xf32>
    %3 = arith.truncf %2 : vector<8x8x128xf32> to vector<8x8x128xbf16>
    %4 = vector.extract_strided_slice %3 {offsets = [0, 0, 0], sizes = [8, 1, 128], strides = [1, 1, 1]} : vector<8x8x128xbf16> to vector<8x1x128xbf16>
    %5 = vector.shape_cast %4 : vector<8x1x128xbf16> to vector<8x128xbf16>
    %c0_2 = arith.constant 0 : index
    %c0_3 = arith.constant 0 : index
    %c0_4 = arith.constant 0 : index
    %6 = vector.load %arg2[%c0_2, %c0_3, %c0_4] : memref<8x128x128xbf16, #tpu.memory_space<vmem>>, vector<1x128x128xbf16>
    %7 = vector.shape_cast %6 : vector<1x128x128xbf16> to vector<128x128xbf16>
    %cst_5 = arith.constant dense<0.000000e+00> : vector<8x128xf32>
    %8 = tpu.matmul %5, %7, %cst_5 {dimension_numbers = #tpu.dot_dimension_numbers<[1], [0], [0], [1], [0, 0, 1, 1], [], []>} : vector<8x128xbf16>, vector<128x128xbf16>, vector<8x128xf32> -> vector<8x128xf32>
    %c0_6 = arith.constant 0 : index
    %c0_7 = arith.constant 0 : index
    %c0_8 = arith.constant 0 : index
    %9 = vector.load %arg3[%c0_6, %c0_7, %c0_8] : memref<8x1x128xf32, #tpu.memory_space<vmem>>, vector<1x1x128xf32>
    %10 = vector.shape_cast %9 : vector<1x1x128xf32> to vector<1x128xf32>
    %11 = vector.broadcast %10 : vector<1x128xf32> to vector<8x128xf32>
    %12 = arith.addf %8, %11 : vector<8x128xf32>
    %cst_9 = arith.constant 0.000000e+00 : f32
    %13 = vector.broadcast %cst_9 : f32 to vector<8x128xf32>
    %14 = arith.maximumf %12, %13 : vector<8x128xf32>
    %15 = arith.truncf %14 : vector<8x128xf32> to vector<8x128xbf16>
    %c0_10 = arith.constant 0 : index
    %c0_11 = arith.constant 0 : index
    %c0_12 = arith.constant 0 : index
    %16 = vector.load %arg4[%c0_10, %c0_11, %c0_12] : memref<8x128x128xbf16, #tpu.memory_space<vmem>>, vector<1x128x128xbf16>
    %17 = vector.shape_cast %16 : vector<1x128x128xbf16> to vector<128x128xbf16>
    %cst_13 = arith.constant dense<0.000000e+00> : vector<8x128xf32>
    %18 = tpu.matmul %15, %17, %cst_13 {dimension_numbers = #tpu.dot_dimension_numbers<[1], [0], [0], [1], [0, 0, 1, 1], [], []>} : vector<8x128xbf16>, vector<128x128xbf16>, vector<8x128xf32> -> vector<8x128xf32>
    %19 = vector.extract_strided_slice %0 {offsets = [0, 0, 0], sizes = [8, 1, 128], strides = [1, 1, 1]} : vector<8x8x128xf32> to vector<8x1x128xf32>
    %20 = vector.shape_cast %19 : vector<8x1x128xf32> to vector<8x128xf32>
    %21 = arith.addf %20, %18 : vector<8x128xf32>
    %c0_14 = arith.constant 0 : index
    %c0_15 = arith.constant 0 : index
    %c0_16 = arith.constant 0 : index
    %22 = vector.load %arg5[%c0_14, %c0_15, %c0_16] : memref<8x1x128xf32, #tpu.memory_space<vmem>>, vector<1x1x128xf32>
    %23 = vector.shape_cast %22 : vector<1x1x128xf32> to vector<1x128xf32>
    %24 = vector.broadcast %23 : vector<1x128xf32> to vector<8x128xf32>
    %25 = arith.addf %21, %24 : vector<8x128xf32>
    %c0_17 = arith.constant 0 : index
    %c0_18 = arith.constant 0 : index
    %c0_19 = arith.constant 0 : index
    %26 = vector.load %arg6[%c0_17, %c0_18, %c0_19] : memref<8x8x128xf32, #tpu.memory_space<vmem>>, vector<8x1x128xf32>
    %27 = vector.shape_cast %26 : vector<8x1x128xf32> to vector<8x128xf32>
    %28 = vector.shape_cast %25 : vector<8x128xf32> to vector<8x1x128xf32>
    tpu.vector_store %arg6[%c0_17, %c0_18, %c0_19], %28 {strides = array<i32>} : memref<8x8x128xf32, #tpu.memory_space<vmem>>, vector<8x1x128xf32>,
    %29 = vector.extract_strided_slice %3 {offsets = [0, 1, 0], sizes = [8, 1, 128], strides = [1, 1, 1]} : vector<8x8x128xbf16> to vector<8x1x128xbf16>
    %30 = vector.shape_cast %29 : vector<8x1x128xbf16> to vector<8x128xbf16>
    %c1 = arith.constant 1 : index
    %c0_20 = arith.constant 0 : index
    %c0_21 = arith.constant 0 : index
    %31 = vector.load %arg2[%c1, %c0_20, %c0_21] : memref<8x128x128xbf16, #tpu.memory_space<vmem>>, vector<1x128x128xbf16>
    %32 = vector.shape_cast %31 : vector<1x128x128xbf16> to vector<128x128xbf16>
    %cst_22 = arith.constant dense<0.000000e+00> : vector<8x128xf32>
    %33 = tpu.matmul %30, %32, %cst_22 {dimension_numbers = #tpu.dot_dimension_numbers<[1], [0], [0], [1], [0, 0, 1, 1], [], []>} : vector<8x128xbf16>, vector<128x128xbf16>, vector<8x128xf32> -> vector<8x128xf32>
    %c1_23 = arith.constant 1 : index
    %c0_24 = arith.constant 0 : index
    %c0_25 = arith.constant 0 : index
    %34 = vector.load %arg3[%c1_23, %c0_24, %c0_25] : memref<8x1x128xf32, #tpu.memory_space<vmem>>, vector<1x1x128xf32>
    %35 = vector.shape_cast %34 : vector<1x1x128xf32> to vector<1x128xf32>
    %36 = vector.broadcast %35 : vector<1x128xf32> to vector<8x128xf32>
    %37 = arith.addf %33, %36 : vector<8x128xf32>
    %cst_26 = arith.constant 0.000000e+00 : f32
    %38 = vector.broadcast %cst_26 : f32 to vector<8x128xf32>
    %39 = arith.maximumf %37, %38 : vector<8x128xf32>
    %40 = arith.truncf %39 : vector<8x128xf32> to vector<8x128xbf16>
    %c1_27 = arith.constant 1 : index
    %c0_28 = arith.constant 0 : index
    %c0_29 = arith.constant 0 : index
    %41 = vector.load %arg4[%c1_27, %c0_28, %c0_29] : memref<8x128x128xbf16, #tpu.memory_space<vmem>>, vector<1x128x128xbf16>
    %42 = vector.shape_cast %41 : vector<1x128x128xbf16> to vector<128x128xbf16>
    %cst_30 = arith.constant dense<0.000000e+00> : vector<8x128xf32>
    %43 = tpu.matmul %40, %42, %cst_30 {dimension_numbers = #tpu.dot_dimension_numbers<[1], [0], [0], [1], [0, 0, 1, 1], [], []>} : vector<8x128xbf16>, vector<128x128xbf16>, vector<8x128xf32> -> vector<8x128xf32>
    %44 = vector.extract_strided_slice %0 {offsets = [0, 1, 0], sizes = [8, 1, 128], strides = [1, 1, 1]} : vector<8x8x128xf32> to vector<8x1x128xf32>
    %45 = vector.shape_cast %44 : vector<8x1x128xf32> to vector<8x128xf32>
    %46 = arith.addf %45, %43 : vector<8x128xf32>
    %c1_31 = arith.constant 1 : index
    %c0_32 = arith.constant 0 : index
    %c0_33 = arith.constant 0 : index
    %47 = vector.load %arg5[%c1_31, %c0_32, %c0_33] : memref<8x1x128xf32, #tpu.memory_space<vmem>>, vector<1x1x128xf32>
    %48 = vector.shape_cast %47 : vector<1x1x128xf32> to vector<1x128xf32>
    %49 = vector.broadcast %48 : vector<1x128xf32> to vector<8x128xf32>
    %50 = arith.addf %46, %49 : vector<8x128xf32>
    %c0_34 = arith.constant 0 : index
    %c1_35 = arith.constant 1 : index
    %c0_36 = arith.constant 0 : index
    %51 = vector.load %arg6[%c0_34, %c1_35, %c0_36] : memref<8x8x128xf32, #tpu.memory_space<vmem>>, vector<8x1x128xf32>
    %52 = vector.shape_cast %51 : vector<8x1x128xf32> to vector<8x128xf32>
    %53 = vector.shape_cast %50 : vector<8x128xf32> to vector<8x1x128xf32>
    tpu.vector_store %arg6[%c0_34, %c1_35, %c0_36], %53 {strides = array<i32>} : memref<8x8x128xf32, #tpu.memory_space<vmem>>, vector<8x1x128xf32>,
    %54 = vector.extract_strided_slice %3 {offsets = [0, 2, 0], sizes = [8, 1, 128], strides = [1, 1, 1]} : vector<8x8x128xbf16> to vector<8x1x128xbf16>
    %55 = vector.shape_cast %54 : vector<8x1x128xbf16> to vector<8x128xbf16>
    %c2 = arith.constant 2 : index
    %c0_37 = arith.constant 0 : index
    %c0_38 = arith.constant 0 : index
    %56 = vector.load %arg2[%c2, %c0_37, %c0_38] : memref<8x128x128xbf16, #tpu.memory_space<vmem>>, vector<1x128x128xbf16>
    %57 = vector.shape_cast %56 : vector<1x128x128xbf16> to vector<128x128xbf16>
    %cst_39 = arith.constant dense<0.000000e+00> : vector<8x128xf32>
    %58 = tpu.matmul %55, %57, %cst_39 {dimension_numbers = #tpu.dot_dimension_numbers<[1], [0], [0], [1], [0, 0, 1, 1], [], []>} : vector<8x128xbf16>, vector<128x128xbf16>, vector<8x128xf32> -> vector<8x128xf32>
    %c2_40 = arith.constant 2 : index
    %c0_41 = arith.constant 0 : index
    %c0_42 = arith.constant 0 : index
    %59 = vector.load %arg3[%c2_40, %c0_41, %c0_42] : memref<8x1x128xf32, #tpu.memory_space<vmem>>, vector<1x1x128xf32>
    %60 = vector.shape_cast %59 : vector<1x1x128xf32> to vector<1x128xf32>
    %61 = vector.broadcast %60 : vector<1x128xf32> to vector<8x128xf32>
    %62 = arith.addf %58, %61 : vector<8x128xf32>
    %cst_43 = arith.constant 0.000000e+00 : f32
    %63 = vector.broadcast %cst_43 : f32 to vector<8x128xf32>
    %64 = arith.maximumf %62, %63 : vector<8x128xf32>
    %65 = arith.truncf %64 : vector<8x128xf32> to vector<8x128xbf16>
    %c2_44 = arith.constant 2 : index
    %c0_45 = arith.constant 0 : index
    %c0_46 = arith.constant 0 : index
    %66 = vector.load %arg4[%c2_44, %c0_45, %c0_46] : memref<8x128x128xbf16, #tpu.memory_space<vmem>>, vector<1x128x128xbf16>
    %67 = vector.shape_cast %66 : vector<1x128x128xbf16> to vector<128x128xbf16>
    %cst_47 = arith.constant dense<0.000000e+00> : vector<8x128xf32>
    %68 = tpu.matmul %65, %67, %cst_47 {dimension_numbers = #tpu.dot_dimension_numbers<[1], [0], [0], [1], [0, 0, 1, 1], [], []>} : vector<8x128xbf16>, vector<128x128xbf16>, vector<8x128xf32> -> vector<8x128xf32>
    %69 = vector.extract_strided_slice %0 {offsets = [0, 2, 0], sizes = [8, 1, 128], strides = [1, 1, 1]} : vector<8x8x128xf32> to vector<8x1x128xf32>
    %70 = vector.shape_cast %69 : vector<8x1x128xf32> to vector<8x128xf32>
    %71 = arith.addf %70, %68 : vector<8x128xf32>
    %c2_48 = arith.constant 2 : index
    %c0_49 = arith.constant 0 : index
    %c0_50 = arith.constant 0 : index
    %72 = vector.load %arg5[%c2_48, %c0_49, %c0_50] : memref<8x1x128xf32, #tpu.memory_space<vmem>>, vector<1x1x128xf32>
    %73 = vector.shape_cast %72 : vector<1x1x128xf32> to vector<1x128xf32>
    %74 = vector.broadcast %73 : vector<1x128xf32> to vector<8x128xf32>
    %75 = arith.addf %71, %74 : vector<8x128xf32>
    %c0_51 = arith.constant 0 : index
    %c2_52 = arith.constant 2 : index
    %c0_53 = arith.constant 0 : index
    %76 = vector.load %arg6[%c0_51, %c2_52, %c0_53] : memref<8x8x128xf32, #tpu.memory_space<vmem>>, vector<8x1x128xf32>
    %77 = vector.shape_cast %76 : vector<8x1x128xf32> to vector<8x128xf32>
    %78 = vector.shape_cast %75 : vector<8x128xf32> to vector<8x1x128xf32>
    tpu.vector_store %arg6[%c0_51, %c2_52, %c0_53], %78 {strides = array<i32>} : memref<8x8x128xf32, #tpu.memory_space<vmem>>, vector<8x1x128xf32>,
    %79 = vector.extract_strided_slice %3 {offsets = [0, 3, 0], sizes = [8, 1, 128], strides = [1, 1, 1]} : vector<8x8x128xbf16> to vector<8x1x128xbf16>
    %80 = vector.shape_cast %79 : vector<8x1x128xbf16> to vector<8x128xbf16>
    %c3 = arith.constant 3 : index
    %c0_54 = arith.constant 0 : index
    %c0_55 = arith.constant 0 : index
    %81 = vector.load %arg2[%c3, %c0_54, %c0_55] : memref<8x128x128xbf16, #tpu.memory_space<vmem>>, vector<1x128x128xbf16>
    %82 = vector.shape_cast %81 : vector<1x128x128xbf16> to vector<128x128xbf16>
    %cst_56 = arith.constant dense<0.000000e+00> : vector<8x128xf32>
    %83 = tpu.matmul %80, %82, %cst_56 {dimension_numbers = #tpu.dot_dimension_numbers<[1], [0], [0], [1], [0, 0, 1, 1], [], []>} : vector<8x128xbf16>, vector<128x128xbf16>, vector<8x128xf32> -> vector<8x128xf32>
    %c3_57 = arith.constant 3 : index
    %c0_58 = arith.constant 0 : index
    %c0_59 = arith.constant 0 : index
    %84 = vector.load %arg3[%c3_57, %c0_58, %c0_59] : memref<8x1x128xf32, #tpu.memory_space<vmem>>, vector<1x1x128xf32>
    %85 = vector.shape_cast %84 : vector<1x1x128xf32> to vector<1x128xf32>
    %86 = vector.broadcast %85 : vector<1x128xf32> to vector<8x128xf32>
    %87 = arith.addf %83, %86 : vector<8x128xf32>
    %cst_60 = arith.constant 0.000000e+00 : f32
    %88 = vector.broadcast %cst_60 : f32 to vector<8x128xf32>
    %89 = arith.maximumf %87, %88 : vector<8x128xf32>
    %90 = arith.truncf %89 : vector<8x128xf32> to vector<8x128xbf16>
    %c3_61 = arith.constant 3 : index
    %c0_62 = arith.constant 0 : index
    %c0_63 = arith.constant 0 : index
    %91 = vector.load %arg4[%c3_61, %c0_62, %c0_63] : memref<8x128x128xbf16, #tpu.memory_space<vmem>>, vector<1x128x128xbf16>
    %92 = vector.shape_cast %91 : vector<1x128x128xbf16> to vector<128x128xbf16>
    %cst_64 = arith.constant dense<0.000000e+00> : vector<8x128xf32>
    %93 = tpu.matmul %90, %92, %cst_64 {dimension_numbers = #tpu.dot_dimension_numbers<[1], [0], [0], [1], [0, 0, 1, 1], [], []>} : vector<8x128xbf16>, vector<128x128xbf16>, vector<8x128xf32> -> vector<8x128xf32>
    %94 = vector.extract_strided_slice %0 {offsets = [0, 3, 0], sizes = [8, 1, 128], strides = [1, 1, 1]} : vector<8x8x128xf32> to vector<8x1x128xf32>
    %95 = vector.shape_cast %94 : vector<8x1x128xf32> to vector<8x128xf32>
    %96 = arith.addf %95, %93 : vector<8x128xf32>
    %c3_65 = arith.constant 3 : index
    %c0_66 = arith.constant 0 : index
    %c0_67 = arith.constant 0 : index
    %97 = vector.load %arg5[%c3_65, %c0_66, %c0_67] : memref<8x1x128xf32, #tpu.memory_space<vmem>>, vector<1x1x128xf32>
    %98 = vector.shape_cast %97 : vector<1x1x128xf32> to vector<1x128xf32>
    %99 = vector.broadcast %98 : vector<1x128xf32> to vector<8x128xf32>
    %100 = arith.addf %96, %99 : vector<8x128xf32>
    %c0_68 = arith.constant 0 : index
    %c3_69 = arith.constant 3 : index
    %c0_70 = arith.constant 0 : index
    %101 = vector.load %arg6[%c0_68, %c3_69, %c0_70] : memref<8x8x128xf32, #tpu.memory_space<vmem>>, vector<8x1x128xf32>
    %102 = vector.shape_cast %101 : vector<8x1x128xf32> to vector<8x128xf32>
    %103 = vector.shape_cast %100 : vector<8x128xf32> to vector<8x1x128xf32>
    tpu.vector_store %arg6[%c0_68, %c3_69, %c0_70], %103 {strides = array<i32>} : memref<8x8x128xf32, #tpu.memory_space<vmem>>, vector<8x1x128xf32>,
    %104 = vector.extract_strided_slice %3 {offsets = [0, 4, 0], sizes = [8, 1, 128], strides = [1, 1, 1]} : vector<8x8x128xbf16> to vector<8x1x128xbf16>
    %105 = vector.shape_cast %104 : vector<8x1x128xbf16> to vector<8x128xbf16>
    %c4 = arith.constant 4 : index
    %c0_71 = arith.constant 0 : index
    %c0_72 = arith.constant 0 : index
    %106 = vector.load %arg2[%c4, %c0_71, %c0_72] : memref<8x128x128xbf16, #tpu.memory_space<vmem>>, vector<1x128x128xbf16>
    %107 = vector.shape_cast %106 : vector<1x128x128xbf16> to vector<128x128xbf16>
    %cst_73 = arith.constant dense<0.000000e+00> : vector<8x128xf32>
    %108 = tpu.matmul %105, %107, %cst_73 {dimension_numbers = #tpu.dot_dimension_numbers<[1], [0], [0], [1], [0, 0, 1, 1], [], []>} : vector<8x128xbf16>, vector<128x128xbf16>, vector<8x128xf32> -> vector<8x128xf32>
    %c4_74 = arith.constant 4 : index
    %c0_75 = arith.constant 0 : index
    %c0_76 = arith.constant 0 : index
    %109 = vector.load %arg3[%c4_74, %c0_75, %c0_76] : memref<8x1x128xf32, #tpu.memory_space<vmem>>, vector<1x1x128xf32>
    %110 = vector.shape_cast %109 : vector<1x1x128xf32> to vector<1x128xf32>
    %111 = vector.broadcast %110 : vector<1x128xf32> to vector<8x128xf32>
    %112 = arith.addf %108, %111 : vector<8x128xf32>
    %cst_77 = arith.constant 0.000000e+00 : f32
    %113 = vector.broadcast %cst_77 : f32 to vector<8x128xf32>
    %114 = arith.maximumf %112, %113 : vector<8x128xf32>
    %115 = arith.truncf %114 : vector<8x128xf32> to vector<8x128xbf16>
    %c4_78 = arith.constant 4 : index
    %c0_79 = arith.constant 0 : index
    %c0_80 = arith.constant 0 : index
    %116 = vector.load %arg4[%c4_78, %c0_79, %c0_80] : memref<8x128x128xbf16, #tpu.memory_space<vmem>>, vector<1x128x128xbf16>
    %117 = vector.shape_cast %116 : vector<1x128x128xbf16> to vector<128x128xbf16>
    %cst_81 = arith.constant dense<0.000000e+00> : vector<8x128xf32>
    %118 = tpu.matmul %115, %117, %cst_81 {dimension_numbers = #tpu.dot_dimension_numbers<[1], [0], [0], [1], [0, 0, 1, 1], [], []>} : vector<8x128xbf16>, vector<128x128xbf16>, vector<8x128xf32> -> vector<8x128xf32>
    %119 = vector.extract_strided_slice %0 {offsets = [0, 4, 0], sizes = [8, 1, 128], strides = [1, 1, 1]} : vector<8x8x128xf32> to vector<8x1x128xf32>
    %120 = vector.shape_cast %119 : vector<8x1x128xf32> to vector<8x128xf32>
    %121 = arith.addf %120, %118 : vector<8x128xf32>
    %c4_82 = arith.constant 4 : index
    %c0_83 = arith.constant 0 : index
    %c0_84 = arith.constant 0 : index
    %122 = vector.load %arg5[%c4_82, %c0_83, %c0_84] : memref<8x1x128xf32, #tpu.memory_space<vmem>>, vector<1x1x128xf32>
    %123 = vector.shape_cast %122 : vector<1x1x128xf32> to vector<1x128xf32>
    %124 = vector.broadcast %123 : vector<1x128xf32> to vector<8x128xf32>
    %125 = arith.addf %121, %124 : vector<8x128xf32>
    %c0_85 = arith.constant 0 : index
    %c4_86 = arith.constant 4 : index
    %c0_87 = arith.constant 0 : index
    %126 = vector.load %arg6[%c0_85, %c4_86, %c0_87] : memref<8x8x128xf32, #tpu.memory_space<vmem>>, vector<8x1x128xf32>
    %127 = vector.shape_cast %126 : vector<8x1x128xf32> to vector<8x128xf32>
    %128 = vector.shape_cast %125 : vector<8x128xf32> to vector<8x1x128xf32>
    tpu.vector_store %arg6[%c0_85, %c4_86, %c0_87], %128 {strides = array<i32>} : memref<8x8x128xf32, #tpu.memory_space<vmem>>, vector<8x1x128xf32>,
    %129 = vector.extract_strided_slice %3 {offsets = [0, 5, 0], sizes = [8, 1, 128], strides = [1, 1, 1]} : vector<8x8x128xbf16> to vector<8x1x128xbf16>
    %130 = vector.shape_cast %129 : vector<8x1x128xbf16> to vector<8x128xbf16>
    %c5 = arith.constant 5 : index
    %c0_88 = arith.constant 0 : index
    %c0_89 = arith.constant 0 : index
    %131 = vector.load %arg2[%c5, %c0_88, %c0_89] : memref<8x128x128xbf16, #tpu.memory_space<vmem>>, vector<1x128x128xbf16>
    %132 = vector.shape_cast %131 : vector<1x128x128xbf16> to vector<128x128xbf16>
    %cst_90 = arith.constant dense<0.000000e+00> : vector<8x128xf32>
    %133 = tpu.matmul %130, %132, %cst_90 {dimension_numbers = #tpu.dot_dimension_numbers<[1], [0], [0], [1], [0, 0, 1, 1], [], []>} : vector<8x128xbf16>, vector<128x128xbf16>, vector<8x128xf32> -> vector<8x128xf32>
    %c5_91 = arith.constant 5 : index
    %c0_92 = arith.constant 0 : index
    %c0_93 = arith.constant 0 : index
    %134 = vector.load %arg3[%c5_91, %c0_92, %c0_93] : memref<8x1x128xf32, #tpu.memory_space<vmem>>, vector<1x1x128xf32>
    %135 = vector.shape_cast %134 : vector<1x1x128xf32> to vector<1x128xf32>
    %136 = vector.broadcast %135 : vector<1x128xf32> to vector<8x128xf32>
    %137 = arith.addf %133, %136 : vector<8x128xf32>
    %cst_94 = arith.constant 0.000000e+00 : f32
    %138 = vector.broadcast %cst_94 : f32 to vector<8x128xf32>
    %139 = arith.maximumf %137, %138 : vector<8x128xf32>
    %140 = arith.truncf %139 : vector<8x128xf32> to vector<8x128xbf16>
    %c5_95 = arith.constant 5 : index
    %c0_96 = arith.constant 0 : index
    %c0_97 = arith.constant 0 : index
    %141 = vector.load %arg4[%c5_95, %c0_96, %c0_97] : memref<8x128x128xbf16, #tpu.memory_space<vmem>>, vector<1x128x128xbf16>
    %142 = vector.shape_cast %141 : vector<1x128x128xbf16> to vector<128x128xbf16>
    %cst_98 = arith.constant dense<0.000000e+00> : vector<8x128xf32>
    %143 = tpu.matmul %140, %142, %cst_98 {dimension_numbers = #tpu.dot_dimension_numbers<[1], [0], [0], [1], [0, 0, 1, 1], [], []>} : vector<8x128xbf16>, vector<128x128xbf16>, vector<8x128xf32> -> vector<8x128xf32>
    %144 = vector.extract_strided_slice %0 {offsets = [0, 5, 0], sizes = [8, 1, 128], strides = [1, 1, 1]} : vector<8x8x128xf32> to vector<8x1x128xf32>
    %145 = vector.shape_cast %144 : vector<8x1x128xf32> to vector<8x128xf32>
    %146 = arith.addf %145, %143 : vector<8x128xf32>
    %c5_99 = arith.constant 5 : index
    %c0_100 = arith.constant 0 : index
    %c0_101 = arith.constant 0 : index
    %147 = vector.load %arg5[%c5_99, %c0_100, %c0_101] : memref<8x1x128xf32, #tpu.memory_space<vmem>>, vector<1x1x128xf32>
    %148 = vector.shape_cast %147 : vector<1x1x128xf32> to vector<1x128xf32>
    %149 = vector.broadcast %148 : vector<1x128xf32> to vector<8x128xf32>
    %150 = arith.addf %146, %149 : vector<8x128xf32>
    %c0_102 = arith.constant 0 : index
    %c5_103 = arith.constant 5 : index
    %c0_104 = arith.constant 0 : index
    %151 = vector.load %arg6[%c0_102, %c5_103, %c0_104] : memref<8x8x128xf32, #tpu.memory_space<vmem>>, vector<8x1x128xf32>
    %152 = vector.shape_cast %151 : vector<8x1x128xf32> to vector<8x128xf32>
    %153 = vector.shape_cast %150 : vector<8x128xf32> to vector<8x1x128xf32>
    tpu.vector_store %arg6[%c0_102, %c5_103, %c0_104], %153 {strides = array<i32>} : memref<8x8x128xf32, #tpu.memory_space<vmem>>, vector<8x1x128xf32>,
    %154 = vector.extract_strided_slice %3 {offsets = [0, 6, 0], sizes = [8, 1, 128], strides = [1, 1, 1]} : vector<8x8x128xbf16> to vector<8x1x128xbf16>
    %155 = vector.shape_cast %154 : vector<8x1x128xbf16> to vector<8x128xbf16>
    %c6 = arith.constant 6 : index
    %c0_105 = arith.constant 0 : index
    %c0_106 = arith.constant 0 : index
    %156 = vector.load %arg2[%c6, %c0_105, %c0_106] : memref<8x128x128xbf16, #tpu.memory_space<vmem>>, vector<1x128x128xbf16>
    %157 = vector.shape_cast %156 : vector<1x128x128xbf16> to vector<128x128xbf16>
    %cst_107 = arith.constant dense<0.000000e+00> : vector<8x128xf32>
    %158 = tpu.matmul %155, %157, %cst_107 {dimension_numbers = #tpu.dot_dimension_numbers<[1], [0], [0], [1], [0, 0, 1, 1], [], []>} : vector<8x128xbf16>, vector<128x128xbf16>, vector<8x128xf32> -> vector<8x128xf32>
    %c6_108 = arith.constant 6 : index
    %c0_109 = arith.constant 0 : index
    %c0_110 = arith.constant 0 : index
    %159 = vector.load %arg3[%c6_108, %c0_109, %c0_110] : memref<8x1x128xf32, #tpu.memory_space<vmem>>, vector<1x1x128xf32>
    %160 = vector.shape_cast %159 : vector<1x1x128xf32> to vector<1x128xf32>
    %161 = vector.broadcast %160 : vector<1x128xf32> to vector<8x128xf32>
    %162 = arith.addf %158, %161 : vector<8x128xf32>
    %cst_111 = arith.constant 0.000000e+00 : f32
    %163 = vector.broadcast %cst_111 : f32 to vector<8x128xf32>
    %164 = arith.maximumf %162, %163 : vector<8x128xf32>
    %165 = arith.truncf %164 : vector<8x128xf32> to vector<8x128xbf16>
    %c6_112 = arith.constant 6 : index
    %c0_113 = arith.constant 0 : index
    %c0_114 = arith.constant 0 : index
    %166 = vector.load %arg4[%c6_112, %c0_113, %c0_114] : memref<8x128x128xbf16, #tpu.memory_space<vmem>>, vector<1x128x128xbf16>
    %167 = vector.shape_cast %166 : vector<1x128x128xbf16> to vector<128x128xbf16>
    %cst_115 = arith.constant dense<0.000000e+00> : vector<8x128xf32>
    %168 = tpu.matmul %165, %167, %cst_115 {dimension_numbers = #tpu.dot_dimension_numbers<[1], [0], [0], [1], [0, 0, 1, 1], [], []>} : vector<8x128xbf16>, vector<128x128xbf16>, vector<8x128xf32> -> vector<8x128xf32>
    %169 = vector.extract_strided_slice %0 {offsets = [0, 6, 0], sizes = [8, 1, 128], strides = [1, 1, 1]} : vector<8x8x128xf32> to vector<8x1x128xf32>
    %170 = vector.shape_cast %169 : vector<8x1x128xf32> to vector<8x128xf32>
    %171 = arith.addf %170, %168 : vector<8x128xf32>
    %c6_116 = arith.constant 6 : index
    %c0_117 = arith.constant 0 : index
    %c0_118 = arith.constant 0 : index
    %172 = vector.load %arg5[%c6_116, %c0_117, %c0_118] : memref<8x1x128xf32, #tpu.memory_space<vmem>>, vector<1x1x128xf32>
    %173 = vector.shape_cast %172 : vector<1x1x128xf32> to vector<1x128xf32>
    %174 = vector.broadcast %173 : vector<1x128xf32> to vector<8x128xf32>
    %175 = arith.addf %171, %174 : vector<8x128xf32>
    %c0_119 = arith.constant 0 : index
    %c6_120 = arith.constant 6 : index
    %c0_121 = arith.constant 0 : index
    %176 = vector.load %arg6[%c0_119, %c6_120, %c0_121] : memref<8x8x128xf32, #tpu.memory_space<vmem>>, vector<8x1x128xf32>
    %177 = vector.shape_cast %176 : vector<8x1x128xf32> to vector<8x128xf32>
    %178 = vector.shape_cast %175 : vector<8x128xf32> to vector<8x1x128xf32>
    tpu.vector_store %arg6[%c0_119, %c6_120, %c0_121], %178 {strides = array<i32>} : memref<8x8x128xf32, #tpu.memory_space<vmem>>, vector<8x1x128xf32>,
    %179 = vector.extract_strided_slice %3 {offsets = [0, 7, 0], sizes = [8, 1, 128], strides = [1, 1, 1]} : vector<8x8x128xbf16> to vector<8x1x128xbf16>
    %180 = vector.shape_cast %179 : vector<8x1x128xbf16> to vector<8x128xbf16>
    %c7 = arith.constant 7 : index
    %c0_122 = arith.constant 0 : index
    %c0_123 = arith.constant 0 : index
    %181 = vector.load %arg2[%c7, %c0_122, %c0_123] : memref<8x128x128xbf16, #tpu.memory_space<vmem>>, vector<1x128x128xbf16>
    %182 = vector.shape_cast %181 : vector<1x128x128xbf16> to vector<128x128xbf16>
    %cst_124 = arith.constant dense<0.000000e+00> : vector<8x128xf32>
    %183 = tpu.matmul %180, %182, %cst_124 {dimension_numbers = #tpu.dot_dimension_numbers<[1], [0], [0], [1], [0, 0, 1, 1], [], []>} : vector<8x128xbf16>, vector<128x128xbf16>, vector<8x128xf32> -> vector<8x128xf32>
    %c7_125 = arith.constant 7 : index
    %c0_126 = arith.constant 0 : index
    %c0_127 = arith.constant 0 : index
    %184 = vector.load %arg3[%c7_125, %c0_126, %c0_127] : memref<8x1x128xf32, #tpu.memory_space<vmem>>, vector<1x1x128xf32>
    %185 = vector.shape_cast %184 : vector<1x1x128xf32> to vector<1x128xf32>
    %186 = vector.broadcast %185 : vector<1x128xf32> to vector<8x128xf32>
    %187 = arith.addf %183, %186 : vector<8x128xf32>
    %cst_128 = arith.constant 0.000000e+00 : f32
    %188 = vector.broadcast %cst_128 : f32 to vector<8x128xf32>
    %189 = arith.maximumf %187, %188 : vector<8x128xf32>
    %190 = arith.truncf %189 : vector<8x128xf32> to vector<8x128xbf16>
    %c7_129 = arith.constant 7 : index
    %c0_130 = arith.constant 0 : index
    %c0_131 = arith.constant 0 : index
    %191 = vector.load %arg4[%c7_129, %c0_130, %c0_131] : memref<8x128x128xbf16, #tpu.memory_space<vmem>>, vector<1x128x128xbf16>
    %192 = vector.shape_cast %191 : vector<1x128x128xbf16> to vector<128x128xbf16>
    %cst_132 = arith.constant dense<0.000000e+00> : vector<8x128xf32>
    %193 = tpu.matmul %190, %192, %cst_132 {dimension_numbers = #tpu.dot_dimension_numbers<[1], [0], [0], [1], [0, 0, 1, 1], [], []>} : vector<8x128xbf16>, vector<128x128xbf16>, vector<8x128xf32> -> vector<8x128xf32>
    %194 = vector.extract_strided_slice %0 {offsets = [0, 7, 0], sizes = [8, 1, 128], strides = [1, 1, 1]} : vector<8x8x128xf32> to vector<8x1x128xf32>
    %195 = vector.shape_cast %194 : vector<8x1x128xf32> to vector<8x128xf32>
    %196 = arith.addf %195, %193 : vector<8x128xf32>
    %c7_133 = arith.constant 7 : index
    %c0_134 = arith.constant 0 : index
    %c0_135 = arith.constant 0 : index
    %197 = vector.load %arg5[%c7_133, %c0_134, %c0_135] : memref<8x1x128xf32, #tpu.memory_space<vmem>>, vector<1x1x128xf32>
    %198 = vector.shape_cast %197 : vector<1x1x128xf32> to vector<1x128xf32>
    %199 = vector.broadcast %198 : vector<1x128xf32> to vector<8x128xf32>
    %200 = arith.addf %196, %199 : vector<8x128xf32>
    %c0_136 = arith.constant 0 : index
    %c7_137 = arith.constant 7 : index
    %c0_138 = arith.constant 0 : index
    %201 = vector.load %arg6[%c0_136, %c7_137, %c0_138] : memref<8x8x128xf32, #tpu.memory_space<vmem>>, vector<8x1x128xf32>
    %202 = vector.shape_cast %201 : vector<8x1x128xf32> to vector<8x128xf32>
    %203 = vector.shape_cast %200 : vector<8x128xf32> to vector<8x1x128xf32>
    tpu.vector_store %arg6[%c0_136, %c7_137, %c0_138], %203 {strides = array<i32>} : memref<8x8x128xf32, #tpu.memory_space<vmem>>, vector<8x1x128xf32>,
    return
  }
  func.func @transform_0(%arg0: i32) -> (i32, i32, i32) {
    %c0_i32 = arith.constant 0 : i32
    %c0_i32_0 = arith.constant 0 : i32
    %c0_i32_1 = arith.constant 0 : i32
    return %c0_i32, %arg0, %c0_i32_0 : i32, i32, i32
  }
  func.func @transform_1(%arg0: i32) -> (i32, i32, i32) {
    %c0_i32 = arith.constant 0 : i32
    %c0_i32_0 = arith.constant 0 : i32
    %c0_i32_1 = arith.constant 0 : i32
    return %arg0, %c0_i32, %c0_i32_0 : i32, i32, i32
  }
  func.func @transform_2(%arg0: i32) -> (i32, i32, i32) {
    %c0_i32 = arith.constant 0 : i32
    %c0_i32_0 = arith.constant 0 : i32
    %c0_i32_1 = arith.constant 0 : i32
    return %arg0, %c0_i32, %c0_i32_0 : i32, i32, i32
  }
  func.func @transform_3(%arg0: i32) -> (i32, i32, i32) {
    %c0_i32 = arith.constant 0 : i32
    %c0_i32_0 = arith.constant 0 : i32
    %c0_i32_1 = arith.constant 0 : i32
    return %arg0, %c0_i32, %c0_i32_0 : i32, i32, i32
  }
  func.func @transform_4(%arg0: i32) -> (i32, i32, i32) {
    %c0_i32 = arith.constant 0 : i32
    %c0_i32_0 = arith.constant 0 : i32
    %c0_i32_1 = arith.constant 0 : i32
    return %arg0, %c0_i32, %c0_i32_0 : i32, i32, i32
  }
  func.func @transform_5(%arg0: i32) -> (i32, i32, i32) {
    %c0_i32 = arith.constant 0 : i32
    %c0_i32_0 = arith.constant 0 : i32
    %c0_i32_1 = arith.constant 0 : i32
    return %c0_i32, %arg0, %c0_i32_0 : i32, i32, i32
  }
}

</mosaic_0001>

<llo_original>
// kernel: tpu_custom_call.1
$region0: #{tpu_custom_call.1}
  #allocation0 [shape = 'u32[]', space=smem, size = 0x4, offset = 0x4, fixed_abs, tag = 'smem constant byte address 0x4 - core index']
  #allocation1 [shape = 'u32[144,128]{1,0:T(1,128)}', space=vmem, size = 0x12000, scoped, tag = 'internal scratch']
  %s0 = inlined_call_operand.hbm [shape: f32[8,16,128], index: 0, kind: input, shape index: {}]
  %s1 = inlined_call_operand.hbm [shape: bf16[16,128,128], index: 1, kind: input, shape index: {}]
  %s2 = inlined_call_operand.hbm [shape: f32[16,1,128], index: 2, kind: input, shape index: {}]
  %s3 = inlined_call_operand.hbm [shape: bf16[16,128,128], index: 3, kind: input, shape index: {}]
  %s4 = inlined_call_operand.hbm [shape: f32[16,1,128], index: 4, kind: input, shape index: {}]
  %s5 = inlined_call_operand.hbm [shape: f32[8,16,128], index: 5, kind: output, shape index: {}]
  %s6 = sld [smem:[#allocation0]]
  $region73: #{tpu_custom_call.1} parent=0
    _
  %s8 = ssub.s32 1, %s6
  %s9 = scalar_select 0, %s8, %s6
  $region1: #{tpu_custom_call.1} parent=0
    #allocation2 [shape = 'u8[65536]{0}', space=vmem, size = 0x10000, scoped, tag = 'input window, operand 0']
    #allocation3 [shape = 's32[2]{0}', space=sflag, size = 0x8, scoped, tag = 'scoped memory for tpu_custom_call.1']
    #allocation4 [shape = 's32[2]{0}', space=sflag, size = 0x8, scoped, tag = 'scoped memory for tpu_custom_call.1']
    #allocation5 [shape = 'u8[524288]{0}', space=vmem, size = 0x80000, scoped, tag = 'input window, operand 1']
    #allocation6 [shape = 's32[2]{0}', space=sflag, size = 0x8, scoped, tag = 'scoped memory for tpu_custom_call.1']
    #allocation7 [shape = 'u8[8192]{0}', space=vmem, size = 0x2000, scoped, tag = 'input window, operand 2']
    #allocation8 [shape = 'u8[524288]{0}', space=vmem, size = 0x80000, scoped, tag = 'input window, operand 3']
    #allocation9 [shape = 's32[2]{0}', space=sflag, size = 0x8, scoped, tag = 'scoped memory for tpu_custom_call.1']
    #allocation10 [shape = 'u8[8192]{0}', space=vmem, size = 0x2000, scoped, tag = 'input window, operand 4']
    #allocation11 [shape = 'u8[65536]{0}', space=vmem, size = 0x10000, scoped, tag = 'output window, operand 0']
    %10 = vsyncpa [#allocation3], 0
    %s11 = scalar_lea.sflag [#allocation3], 1
    %12 = vsyncpa %s11, 0
    %13 = vsyncpa [#allocation6], 0
    %s14 = scalar_lea.sflag [#allocation6], 1
    %15 = vsyncpa %s14, 0
    %16 = vsyncpa [#allocation9], 0
    %s17 = scalar_lea.sflag [#allocation9], 1
    %18 = vsyncpa %s17, 0
    %19 = vsyncpa [#allocation4], 0
    %s20 = scalar_lea.sflag [#allocation4], 1
    %21 = vsyncpa %s20, 0
    loop: start=0, step=1, limit=4
    $region2: #{tpu_custom_call.1} parent=1 // loop_pre_header
      _
    $region3: #{tpu_custom_call.1} parent=1 // loop_header
      %s23 = sphi 0, %s27
      %p24 = scmp.ge.s32.totalorder %s23, 4
      %s33 = sphi 0, %s35
      %s36 = sphi 0, %s33
      %s37 = sphi 0, %s36
      %s53 = sphi 0, %s37
      %s59 = sphi 0, %s61
      %s62 = sphi 0, %s59
      %s63 = sphi 0, %s62
      %s79 = sphi 0, %s63
      %s85 = sphi 0, %s87
      %s88 = sphi 0, %s85
      %s89 = sphi 0, %s88
      %s105 = sphi 0, %s89
      %s111 = sphi 0, %s113
      %s114 = sphi 0, %s111
      %s115 = sphi 0, %s114
      %s131 = sphi 0, %s115
      %s137 = sphi 0, %s139
      %s140 = sphi 0, %s137
      %s141 = sphi 0, %s140
      %s157 = sphi 0, %s141
      %s163 = sphi 0, %s165
      %s166 = sphi 0, %s163
      %s167 = sphi 0, %s166
      %s183 = sphi 0, %s167
    $region4: #{tpu_custom_call.1} parent=1 // loop_header_branch
      %26 = sbr.rel (%p24) target = $region8
    $region5: #{tpu_custom_call.1} parent=1 // loop_body
      %s28 = ssub.s32 %s23, 1
      %s29 = ssub.s32 %s23, 2
      %s30 = sadd.s32 %s23, 1
      %s31 = ssub.s32 %s23, %s30
      %p32 = scmp.eq.s32.totalorder %s31, 0
      %s34 = sadd.s32 %s33, 1
      %s35 = scalar_select %p32, %s33, %s34
      %p38 = pneg %p32
      %p39 = scmp.eq.s32.totalorder %s23, 1
      %p40 = por %p38, %p39
      %p41 = scmp.ne.s32.totalorder %s33, %s36
      %p42 = scmp.eq.s32.totalorder %s23, 0
      %p43 = por %p41, %p42
      %p44 = scmp.ne.s32.totalorder %s33, %s36
      %p45 = scmp.eq.s32.totalorder %s28, 1
      %p46 = por %p44, %p45
      %p47 = scmp.ne.s32.totalorder %s36, %s37
      %p48 = scmp.eq.s32.totalorder %s28, 0
      %p49 = por %p47, %p48
      %p50 = scmp.ne.s32.totalorder %s36, %s37
      %p51 = scmp.eq.s32.totalorder %s29, 1
      %p52 = por %p50, %p51
      %p54 = scmp.ne.s32.totalorder %s37, %s53
      %p55 = scmp.eq.s32.totalorder %s29, 0
      %p56 = por %p54, %p55
      %s57 = ssub.s32 %s23, %s30
      %p58 = scmp.eq.s32.totalorder %s57, 0
      %s60 = sadd.s32 %s59, 1
      %s61 = scalar_select %p58, %s59, %s60
      %p64 = pneg %p58
      %p65 = scmp.eq.s32.totalorder %s23, 1
      %p66 = por %p64, %p65
      %p67 = scmp.ne.s32.totalorder %s59, %s62
      %p68 = scmp.eq.s32.totalorder %s23, 0
      %p69 = por %p67, %p68
      %p70 = scmp.ne.s32.totalorder %s59, %s62
      %p71 = scmp.eq.s32.totalorder %s28, 1
      %p72 = por %p70, %p71
      %p73 = scmp.ne.s32.totalorder %s62, %s63
      %p74 = scmp.eq.s32.totalorder %s28, 0
      %p75 = por %p73, %p74
      %p76 = scmp.ne.s32.totalorder %s62, %s63
      %p77 = scmp.eq.s32.totalorder %s29, 1
      %p78 = por %p76, %p77
      %p80 = scmp.ne.s32.totalorder %s63, %s79
      %p81 = scmp.eq.s32.totalorder %s29, 0
      %p82 = por %p80, %p81
      %s83 = ssub.s32 %s23, %s30
      %p84 = scmp.eq.s32.totalorder %s83, 0
      %s86 = sadd.s32 %s85, 1
      %s87 = scalar_select %p84, %s85, %s86
      %p90 = pneg %p84
      %p91 = scmp.eq.s32.totalorder %s23, 1
      %p92 = por %p90, %p91
      %p93 = scmp.ne.s32.totalorder %s85, %s88
      %p94 = scmp.eq.s32.totalorder %s23, 0
      %p95 = por %p93, %p94
      %p96 = scmp.ne.s32.totalorder %s85, %s88
      %p97 = scmp.eq.s32.totalorder %s28, 1
      %p98 = por %p96, %p97
      %p99 = scmp.ne.s32.totalorder %s88, %s89
      %p100 = scmp.eq.s32.totalorder %s28, 0
      %p101 = por %p99, %p100
      %p102 = scmp.ne.s32.totalorder %s88, %s89
      %p103 = scmp.eq.s32.totalorder %s29, 1
      %p104 = por %p102, %p103
      %p106 = scmp.ne.s32.totalorder %s89, %s105
      %p107 = scmp.eq.s32.totalorder %s29, 0
      %p108 = por %p106, %p107
      %s109 = ssub.s32 %s23, %s30
      %p110 = scmp.eq.s32.totalorder %s109, 0
      %s112 = sadd.s32 %s111, 1
      %s113 = scalar_select %p110, %s111, %s112
      %p116 = pneg %p110
      %p117 = scmp.eq.s32.totalorder %s23, 1
      %p118 = por %p116, %p117
      %p119 = scmp.ne.s32.totalorder %s111, %s114
      %p120 = scmp.eq.s32.totalorder %s23, 0
      %p121 = por %p119, %p120
      %p122 = scmp.ne.s32.totalorder %s111, %s114
      %p123 = scmp.eq.s32.totalorder %s28, 1
      %p124 = por %p122, %p123
      %p125 = scmp.ne.s32.totalorder %s114, %s115
      %p126 = scmp.eq.s32.totalorder %s28, 0
      %p127 = por %p125, %p126
      %p128 = scmp.ne.s32.totalorder %s114, %s115
      %p129 = scmp.eq.s32.totalorder %s29, 1
      %p130 = por %p128, %p129
      %p132 = scmp.ne.s32.totalorder %s115, %s131
      %p133 = scmp.eq.s32.totalorder %s29, 0
      %p134 = por %p132, %p133
      %s135 = ssub.s32 %s23, %s30
      %p136 = scmp.eq.s32.totalorder %s135, 0
      %s138 = sadd.s32 %s137, 1
      %s139 = scalar_select %p136, %s137, %s138
      %p142 = pneg %p136
      %p143 = scmp.eq.s32.totalorder %s23, 1
      %p144 = por %p142, %p143
      %p145 = scmp.ne.s32.totalorder %s137, %s140
      %p146 = scmp.eq.s32.totalorder %s23, 0
      %p147 = por %p145, %p146
      %p148 = scmp.ne.s32.totalorder %s137, %s140
      %p149 = scmp.eq.s32.totalorder %s28, 1
      %p150 = por %p148, %p149
      %p151 = scmp.ne.s32.totalorder %s140, %s141
      %p152 = scmp.eq.s32.totalorder %s28, 0
      %p153 = por %p151, %p152
      %p154 = scmp.ne.s32.totalorder %s140, %s141
      %p155 = scmp.eq.s32.totalorder %s29, 1
      %p156 = por %p154, %p155
      %p158 = scmp.ne.s32.totalorder %s141, %s157
      %p159 = scmp.eq.s32.totalorder %s29, 0
      %p160 = por %p158, %p159
      %s161 = ssub.s32 %s23, %s30
      %p162 = scmp.eq.s32.totalorder %s161, 0
      %s164 = sadd.s32 %s163, 1
      %s165 = scalar_select %p162, %s163, %s164
      %p168 = pneg %p162
      %p169 = scmp.eq.s32.totalorder %s23, 1
      %p170 = por %p168, %p169
      %p171 = scmp.ne.s32.totalorder %s163, %s166
      %p172 = scmp.eq.s32.totalorder %s23, 0
      %p173 = por %p171, %p172
      %p174 = scmp.ne.s32.totalorder %s163, %s166
      %p175 = scmp.eq.s32.totalorder %s28, 1
      %p176 = por %p174, %p175
      %p177 = scmp.ne.s32.totalorder %s166, %s167
      %p178 = scmp.eq.s32.totalorder %s28, 0
      %p179 = por %p177, %p178
      %p180 = scmp.ne.s32.totalorder %s166, %s167
      %p181 = scmp.eq.s32.totalorder %s29, 1
      %p182 = por %p180, %p181
      %p184 = scmp.ne.s32.totalorder %s167, %s183
      %p185 = scmp.eq.s32.totalorder %s29, 0
      %p186 = por %p184, %p185
      %p187 = scmp.le.s32.totalorder 1, %s23
      %p188 = scmp.lt.s32.totalorder %s23, 3
      %p189 = pnand %p187, %p188
      %p190 = pneg %p189
      // Predicated region
      $region9: #{tpu_custom_call.1} parent=5 // pred_check
        _
      $region10: #{tpu_custom_call.1} parent=5 // pred_check_branch
        %192 = sbr.rel (%p189) target = $region12
      $region11: #{tpu_custom_call.1} parent=5 // pred_region
        %s193 = ssub.s32 %s23, 1
      $region12: #{tpu_custom_call.1} parent=5 // pred_fallthru
        _
      %p194 = scmp.lt.s32.totalorder %s23, 2
      // Predicated region
      $region13: #{tpu_custom_call.1} parent=5 // pred_check
        %p195 = pneg %p194
      $region14: #{tpu_custom_call.1} parent=5 // pred_check_branch
        %197 = sbr.rel (%p195) target = $region16
      $region15: #{tpu_custom_call.1} parent=5 // pred_region
        // Predicated region
        $region17: #{tpu_custom_call.1} parent=15 // pred_check
          %p198 = pneg %p43
        $region18: #{tpu_custom_call.1} parent=15 // pred_check_branch
          %200 = sbr.rel (%p198) target = $region20
        $region19: #{tpu_custom_call.1} parent=15 // pred_region
          %s201 = sand.u32 %s33, 1
          %s202 = scalar_lea.sflag [#allocation3], %s201
          %s203 = sand.u32 %s33, 1
          %s204 = smul.addr %s203, 64
          %s205 = scalar_lea.vmem [#allocation2], %s204
          %s207 = ssub.s32 1024, 1024
          %208 = vsyncadd %s202, %s207
          %s209 = smul.addr %s23, 128
          %s210 = scalar_lea.hbm %s0, %s209
          %s211 = sshll.u32 %s205, 4
          %s212 = int_to_ptr.vmem [resolvable:$true] %s211
          %217 = dma.hbm_to_vmem [thread:$0]  %s210, 1024, %s212, %s202, 256, 128, 8
        $region20: #{tpu_custom_call.1} parent=15 // pred_fallthru
          _
        // Predicated region
        $region21: #{tpu_custom_call.1} parent=15 // pred_check
          %p218 = pneg %p69
        $region22: #{tpu_custom_call.1} parent=15 // pred_check_branch
          %220 = sbr.rel (%p218) target = $region24
        $region23: #{tpu_custom_call.1} parent=15 // pred_region
          %s221 = sand.u32 %s23, 1
          %s222 = scalar_lea.sflag [#allocation6], %s221
          %s223 = sand.u32 %s59, 1
          %s224 = smul.addr %s223, 512
          %s225 = scalar_lea.vmem [#allocation5], %s224
          %s226 = smul.u32 8, %s23
          %s228 = ssub.s32 8192, 8192
          %229 = vsyncadd %s222, %s228
          %s230 = smul.addr %s226, 16
          %s231 = smul.addr %s230, 64
          %s232 = scalar_lea.hbm %s1, %s231
          %s233 = sshll.u32 %s225, 4
          %s234 = int_to_ptr.vmem [resolvable:$true] %s233
          %239 = dma.hbm_to_vmem [thread:$0]  %s232, 8192, %s234, %s222, 64, 64, 4
        $region24: #{tpu_custom_call.1} parent=15 // pred_fallthru
          _
        // Predicated region
        $region25: #{tpu_custom_call.1} parent=15 // pred_check
          %p240 = pneg %p95
        $region26: #{tpu_custom_call.1} parent=15 // pred_check_branch
          %242 = sbr.rel (%p240) target = $region28
        $region27: #{tpu_custom_call.1} parent=15 // pred_region
          %s243 = sand.u32 %s23, 1
          %s244 = scalar_lea.sflag [#allocation6], %s243
          %s245 = sand.u32 %s85, 1
          %s246 = smul.addr %s245, 8
          %s247 = scalar_lea.vmem [#allocation7], %s246
          %s248 = smul.u32 8, %s23
          %s250 = ssub.s32 128, 128
          %251 = vsyncadd %s244, %s250
          %s252 = smul.addr %s248, 16
          %s253 = scalar_lea.hbm %s2, %s252
          %s254 = sshll.u32 %s247, 4
          %s255 = int_to_ptr.vmem [resolvable:$true] %s254
          %260 = dma.hbm_to_vmem [thread:$0]  %s253, 128, %s255, %s244, 16, 16, 1
        $region28: #{tpu_custom_call.1} parent=15 // pred_fallthru
          _
        // Predicated region
        $region29: #{tpu_custom_call.1} parent=15 // pred_check
          %p261 = pneg %p121
        $region30: #{tpu_custom_call.1} parent=15 // pred_check_branch
          %263 = sbr.rel (%p261) target = $region32
        $region31: #{tpu_custom_call.1} parent=15 // pred_region
          %s264 = sand.u32 %s23, 1
          %s265 = scalar_lea.sflag [#allocation9], %s264
          %s266 = sand.u32 %s111, 1
          %s267 = smul.addr %s266, 512
          %s268 = scalar_lea.vmem [#allocation8], %s267
          %s269 = smul.u32 8, %s23
          %s271 = ssub.s32 8192, 8192
          %272 = vsyncadd %s265, %s271
          %s273 = smul.addr %s269, 16
          %s274 = smul.addr %s273, 64
          %s275 = scalar_lea.hbm %s3, %s274
          %s276 = sshll.u32 %s268, 4
          %s277 = int_to_ptr.vmem [resolvable:$true] %s276
          %282 = dma.hbm_to_vmem [thread:$0]  %s275, 8192, %s277, %s265, 64, 64, 4
        $region32: #{tpu_custom_call.1} parent=15 // pred_fallthru
          _
        // Predicated region
        $region33: #{tpu_custom_call.1} parent=15 // pred_check
          %p283 = pneg %p147
        $region34: #{tpu_custom_call.1} parent=15 // pred_check_branch
          %285 = sbr.rel (%p283) target = $region36
        $region35: #{tpu_custom_call.1} parent=15 // pred_region
          %s286 = sand.u32 %s23, 1
          %s287 = scalar_lea.sflag [#allocation9], %s286
          %s288 = sand.u32 %s137, 1
          %s289 = smul.addr %s288, 8
          %s290 = scalar_lea.vmem [#allocation10], %s289
          %s291 = smul.u32 8, %s23
          %s293 = ssub.s32 128, 128
          %294 = vsyncadd %s287, %s293
          %s295 = smul.addr %s291, 16
          %s296 = scalar_lea.hbm %s4, %s295
          %s297 = sshll.u32 %s290, 4
          %s298 = int_to_ptr.vmem [resolvable:$true] %s297
          %303 = dma.hbm_to_vmem [thread:$0]  %s296, 128, %s298, %s287, 16, 16, 1
        $region36: #{tpu_custom_call.1} parent=15 // pred_fallthru
          _
      $region16: #{tpu_custom_call.1} parent=5 // pred_fallthru
        _
      %p304 = scmp.le.s32.totalorder 1, %s23
      %p305 = scmp.lt.s32.totalorder %s23, 3
      %p306 = pnand %p304, %p305
      %p307 = pneg %p306
      // Predicated region
      $region37: #{tpu_custom_call.1} parent=5 // pred_check
        _
      $region38: #{tpu_custom_call.1} parent=5 // pred_check_branch
        %309 = sbr.rel (%p306) target = $region40
      $region39: #{tpu_custom_call.1} parent=5 // pred_region
        %s310 = ssub.s32 %s23, 1
        %s311 = sand.u32 %s36, 1
        %s312 = scalar_lea.sflag [#allocation3], %s311
        %s313 = sand.u32 %s36, 1
        %s314 = smul.addr %s313, 64
        %s315 = scalar_lea.vmem [#allocation2], %s314
        // Predicated region
        $region41: #{tpu_custom_call.1} parent=39 // pred_check
          %p316 = pneg %p49
        $region42: #{tpu_custom_call.1} parent=39 // pred_check_branch
          %318 = sbr.rel (%p316) target = $region44
        $region43: #{tpu_custom_call.1} parent=39 // pred_region
          %319 = dma.done %s312, 1024
        $region44: #{tpu_custom_call.1} parent=39 // pred_fallthru
          _
        %s320 = sand.u32 %s28, 1
        %s321 = scalar_lea.sflag [#allocation6], %s320
        %s322 = sand.u32 %s62, 1
        %s323 = smul.addr %s322, 512
        %s324 = scalar_lea.vmem [#allocation5], %s323
        // Predicated region
        $region45: #{tpu_custom_call.1} parent=39 // pred_check
          %p325 = pneg %p75
        $region46: #{tpu_custom_call.1} parent=39 // pred_check_branch
          %327 = sbr.rel (%p325) target = $region48
        $region47: #{tpu_custom_call.1} parent=39 // pred_region
          %328 = dma.done %s321, 8192
        $region48: #{tpu_custom_call.1} parent=39 // pred_fallthru
          _
        %s329 = sand.u32 %s28, 1
        %s330 = scalar_lea.sflag [#allocation6], %s329
        %s331 = sand.u32 %s88, 1
        %s332 = smul.addr %s331, 8
        %s333 = scalar_lea.vmem [#allocation7], %s332
        // Predicated region
        $region49: #{tpu_custom_call.1} parent=39 // pred_check
          %p334 = pneg %p101
        $region50: #{tpu_custom_call.1} parent=39 // pred_check_branch
          %336 = sbr.rel (%p334) target = $region52
        $region51: #{tpu_custom_call.1} parent=39 // pred_region
          %337 = dma.done %s330, 128
        $region52: #{tpu_custom_call.1} parent=39 // pred_fallthru
          _
        %s338 = sand.u32 %s28, 1
        %s339 = scalar_lea.sflag [#allocation9], %s338
        %s340 = sand.u32 %s114, 1
        %s341 = smul.addr %s340, 512
        %s342 = scalar_lea.vmem [#allocation8], %s341
        // Predicated region
        $region53: #{tpu_custom_call.1} parent=39 // pred_check
          %p343 = pneg %p127
        $region54: #{tpu_custom_call.1} parent=39 // pred_check_branch
          %345 = sbr.rel (%p343) target = $region56
        $region55: #{tpu_custom_call.1} parent=39 // pred_region
          %346 = dma.done %s339, 8192
        $region56: #{tpu_custom_call.1} parent=39 // pred_fallthru
          _
        %s347 = sand.u32 %s28, 1
        %s348 = scalar_lea.sflag [#allocation9], %s347
        %s349 = sand.u32 %s140, 1
        %s350 = smul.addr %s349, 8
        %s351 = scalar_lea.vmem [#allocation10], %s350
        // Predicated region
        $region57: #{tpu_custom_call.1} parent=39 // pred_check
          %p352 = pneg %p153
        $region58: #{tpu_custom_call.1} parent=39 // pred_check_branch
          %354 = sbr.rel (%p352) target = $region60
        $region59: #{tpu_custom_call.1} parent=39 // pred_region
          %355 = dma.done %s348, 128
        $region60: #{tpu_custom_call.1} parent=39 // pred_fallthru
          _
        %s356 = sand.u32 %s36, 1
        %s357 = scalar_lea.sflag [#allocation3], %s356
        %s358 = sand.u32 %s36, 1
        %s359 = smul.addr %s358, 64
        %s360 = scalar_lea.vmem [#allocation2], %s359
        %p361 = pneg %p49
        %p362 = pneg %p46
        %s363 = sand.u32 %s28, 1
        %s364 = scalar_lea.sflag [#allocation6], %s363
        %s365 = sand.u32 %s62, 1
        %s366 = smul.addr %s365, 512
        %s367 = scalar_lea.vmem [#allocation5], %s366
        %p368 = pneg %p75
        %p369 = pneg %p72
        %s370 = sand.u32 %s28, 1
        %s371 = scalar_lea.sflag [#allocation6], %s370
        %s372 = sand.u32 %s88, 1
        %s373 = smul.addr %s372, 8
        %s374 = scalar_lea.vmem [#allocation7], %s373
        %p375 = pneg %p101
        %p376 = pneg %p98
        %s377 = sand.u32 %s28, 1
        %s378 = scalar_lea.sflag [#allocation9], %s377
        %s379 = sand.u32 %s114, 1
        %s380 = smul.addr %s379, 512
        %s381 = scalar_lea.vmem [#allocation8], %s380
        %p382 = pneg %p127
        %p383 = pneg %p124
        %s384 = sand.u32 %s28, 1
        %s385 = scalar_lea.sflag [#allocation9], %s384
        %s386 = sand.u32 %s140, 1
        %s387 = smul.addr %s386, 8
        %s388 = scalar_lea.vmem [#allocation10], %s387
        %p389 = pneg %p153
        %p390 = pneg %p150
        %p391 = pneg %p179
        %p392 = pneg %p176
        %s393 = sand.u32 %s166, 1
        %s394 = scalar_lea.sflag [#allocation4], %s393
        %s395 = sand.u32 %s166, 1
        %s396 = smul.addr %s395, 64
        %s397 = scalar_lea.vmem [#allocation11], %s396
        %s398 = smul.u32 8, %s28
        %s399 = smul.u32 8, %s28
        %s400 = smul.u32 8, %s28
        %s401 = smul.u32 8, %s28
        %v403 = vld [vmem:[%s315] sm:$0xff]
        %v404 = vld [vmem:[%s315 + $0x8] sm:$0xff]
        %v405 = vld [vmem:[%s315 + $0x10] sm:$0xff]
        %v406 = vld [vmem:[%s315 + $0x18] sm:$0xff]
        %v407 = vld [vmem:[%s315 + $0x20] sm:$0xff]
        %v408 = vld [vmem:[%s315 + $0x28] sm:$0xff]
        %v409 = vld [vmem:[%s315 + $0x30] sm:$0xff]
        %v410 = vld [vmem:[%s315 + $0x38] sm:$0xff]
        %v411 = vmax.f32 %v403, 0.0
        %v412 = vmax.f32 %v404, 0.0
        %v413 = vmax.f32 %v405, 0.0
        %v414 = vmax.f32 %v406, 0.0
        %v415 = vmax.f32 %v407, 0.0
        %v416 = vmax.f32 %v408, 0.0
        %v417 = vmax.f32 %v409, 0.0
        %v418 = vmax.f32 %v410, 0.0
        %v419 = vpack.c.bf16 %v411, %v411
        %v420 = vpack.c.bf16 %v412, %v412
        %v421 = vpack.c.bf16 %v413, %v413
        %v422 = vpack.c.bf16 %v414, %v414
        %v423 = vpack.c.bf16 %v415, %v415
        %v424 = vpack.c.bf16 %v416, %v416
        %v425 = vpack.c.bf16 %v417, %v417
        %v426 = vpack.c.bf16 %v418, %v418
        %v427 = vld [vmem:[%s324] sm:$0xf]
        %v428 = vld [vmem:[%s324 + $0x4] sm:$0xf]
        %v429 = vld [vmem:[%s324 + $0x8] sm:$0xf]
        %v430 = vld [vmem:[%s324 + $0xc] sm:$0xf]
        %v431 = vld [vmem:[%s324 + $0x10] sm:$0xf]
        %v432 = vld [vmem:[%s324 + $0x14] sm:$0xf]
        %v433 = vld [vmem:[%s324 + $0x18] sm:$0xf]
        %v434 = vld [vmem:[%s324 + $0x1c] sm:$0xf]
        %v435 = vld [vmem:[%s324 + $0x20] sm:$0xf]
        %v436 = vld [vmem:[%s324 + $0x24] sm:$0xf]
        %v437 = vld [vmem:[%s324 + $0x28] sm:$0xf]
        %v438 = vld [vmem:[%s324 + $0x2c] sm:$0xf]
        %v439 = vld [vmem:[%s324 + $0x30] sm:$0xf]
        %v440 = vld [vmem:[%s324 + $0x34] sm:$0xf]
        %v441 = vld [vmem:[%s324 + $0x38] sm:$0xf]
        %v442 = vld [vmem:[%s324 + $0x3c] sm:$0xf]
        %v443 = vld [vmem:[%s333] sm:$0x1]
        %v445 = vlaneseq
        %v446 = vshrl.u32 %v445, 7
        %v447 = vsub.s32 0, %v446
        %v448 = vrot.slane %v443, %v447
        %v458 = vunpack.c.l.b16 %v419
        %v459 = vunpack.c.l.b16 %v420
        %v460 = vunpack.c.l.b16 %v421
        %v461 = vunpack.c.l.b16 %v422
        %v462 = vunpack.c.l.b16 %v423
        %v463 = vunpack.c.l.b16 %v424
        %v464 = vunpack.c.l.b16 %v425
        %v465 = vunpack.c.l.b16 %v426
        %v466 = vrot.slane %v459, 7
        %vm467 = vcmask 1041409
        %v468 = vsel %vm467, %v466, %v458
        %v469 = vrot.slane %v460, 6
        %vm470 = vcmask 1042434
        %v471 = vsel %vm470, %v469, %v468
        %v472 = vrot.slane %v461, 5
        %vm473 = vcmask 1043459
        %v474 = vsel %vm473, %v472, %v471
        %v475 = vrot.slane %v462, 4
        %vm476 = vcmask 1044484
        %v477 = vsel %vm476, %v475, %v474
        %v478 = vrot.slane %v463, 3
        %vm479 = vcmask 1045509
        %v480 = vsel %vm479, %v478, %v477
        %v481 = vrot.slane %v464, 2
        %vm482 = vcmask 1046534
        %v483 = vsel %vm482, %v481, %v480
        %v484 = vrot.slane %v465, 1
        %vm485 = vcmask 1047559
        %v486 = vsel %vm485, %v484, %v483
        %v487 = vpack.c.b16 %v486, %v486
        %v505 = vunpack.c.l.b16 %v427
        %v506 = vunpack.c.l.b16 %v428
        %v507 = vunpack.c.l.b16 %v429
        %v508 = vunpack.c.l.b16 %v430
        %v509 = vunpack.c.l.b16 %v431
        %v510 = vunpack.c.l.b16 %v432
        %v511 = vunpack.c.l.b16 %v433
        %v512 = vunpack.c.l.b16 %v434
        %v513 = vunpack.c.l.b16 %v435
        %v514 = vunpack.c.l.b16 %v436
        %v515 = vunpack.c.l.b16 %v437
        %v516 = vunpack.c.l.b16 %v438
        %v517 = vunpack.c.l.b16 %v439
        %v518 = vunpack.c.l.b16 %v440
        %v519 = vunpack.c.l.b16 %v441
        %v520 = vunpack.c.l.b16 %v442
        %v521 = vpack.c.b16 %v506, %v505
        %v522 = vpack.c.b16 %v508, %v507
        %v523 = vpack.c.b16 %v510, %v509
        %v524 = vpack.c.b16 %v512, %v511
        %v525 = vpack.c.b16 %v514, %v513
        %v526 = vpack.c.b16 %v516, %v515
        %v527 = vpack.c.b16 %v518, %v517
        %v528 = vpack.c.b16 %v520, %v519
        %537 = vmatprep.subr.bf16.mxu0 0
        %538 = vmatpush1.bf16.msra.mxu0 %v521
        %539 = vmatprep.subr.bf16.mxu0 0
        %540 = vmatpush1.bf16.msra.mxu0 %v522
        %541 = vmatprep.subr.bf16.mxu0 0
        %542 = vmatpush1.bf16.msra.mxu0 %v523
        %543 = vmatprep.subr.bf16.mxu0 0
        %544 = vmatpush1.bf16.msra.mxu0 %v524
        %545 = vmatprep.subr.bf16.mxu0 0
        %546 = vmatpush1.bf16.msra.mxu0 %v525
        %547 = vmatprep.subr.bf16.mxu0 0
        %548 = vmatpush1.bf16.msra.mxu0 %v526
        %549 = vmatprep.subr.bf16.mxu0 0
        %550 = vmatpush1.bf16.msra.mxu0 %v527
        %551 = vmatprep.subr.bf16.mxu0 0
        %552 = vmatpush1.bf16.msra.mxu0 %v528
        %553 = vmatprep.subr.bf16.mxu0 0
        %554 = vmatpush1.bf16.msra.mxu0 0
        %555 = vmatprep.subr.bf16.mxu0 0
        %556 = vmatpush1.bf16.msra.mxu0 0
        %557 = vmatprep.subr.bf16.mxu0 0
        %558 = vmatpush1.bf16.msra.mxu0 0
        %559 = vmatprep.subr.bf16.mxu0 0
        %560 = vmatpush1.bf16.msra.mxu0 0
        %561 = vmatprep.subr.bf16.mxu0 0
        %562 = vmatpush1.bf16.msra.mxu0 0
        %563 = vmatprep.subr.bf16.mxu0 0
        %564 = vmatpush1.bf16.msra.mxu0 0
        %565 = vmatprep.subr.bf16.mxu0 0
        %566 = vmatpush1.bf16.msra.mxu0 0
        %567 = vmatprep.subr.bf16.mxu0 0
        %568 = vmatpush1.bf16.msra.mxu0 0
        %569 = vmatprep.mubr.bf16.mxu0 0
        %570 = vmatmul.mubr.bf16.gmra.mrb[0].mxu0 %v487
        %v571 = vpop.f32.mrb[0].mxu0
        %v572 = vadd.f32 %v448, %v571
        %v573 = vpop.f32.mrb[0].mxu0
        %v574 = vpop.f32.mrb[0].mxu0
        %v575 = vpop.f32.mrb[0].mxu0
        %576 = vdwg.mxu0
        %v577 = vmax.f32 %v572, 0.0
        %v578 = vpack.c.bf16 %v577, %v577
        %v579 = vld [vmem:[%s342] sm:$0xf]
        %v580 = vld [vmem:[%s342 + $0x4] sm:$0xf]
        %v581 = vld [vmem:[%s342 + $0x8] sm:$0xf]
        %v582 = vld [vmem:[%s342 + $0xc] sm:$0xf]
        %v583 = vld [vmem:[%s342 + $0x10] sm:$0xf]
        %v584 = vld [vmem:[%s342 + $0x14] sm:$0xf]
        %v585 = vld [vmem:[%s342 + $0x18] sm:$0xf]
        %v586 = vld [vmem:[%s342 + $0x1c] sm:$0xf]
        %v587 = vld [vmem:[%s342 + $0x20] sm:$0xf]
        %v588 = vld [vmem:[%s342 + $0x24] sm:$0xf]
        %v589 = vld [vmem:[%s342 + $0x28] sm:$0xf]
        %v590 = vld [vmem:[%s342 + $0x2c] sm:$0xf]
        %v591 = vld [vmem:[%s342 + $0x30] sm:$0xf]
        %v592 = vld [vmem:[%s342 + $0x34] sm:$0xf]
        %v593 = vld [vmem:[%s342 + $0x38] sm:$0xf]
        %v594 = vld [vmem:[%s342 + $0x3c] sm:$0xf]
        %v611 = vunpack.c.l.b16 %v579
        %v612 = vunpack.c.l.b16 %v580
        %v613 = vunpack.c.l.b16 %v581
        %v614 = vunpack.c.l.b16 %v582
        %v615 = vunpack.c.l.b16 %v583
        %v616 = vunpack.c.l.b16 %v584
        %v617 = vunpack.c.l.b16 %v585
        %v618 = vunpack.c.l.b16 %v586
        %v619 = vunpack.c.l.b16 %v587
        %v620 = vunpack.c.l.b16 %v588
        %v621 = vunpack.c.l.b16 %v589
        %v622 = vunpack.c.l.b16 %v590
        %v623 = vunpack.c.l.b16 %v591
        %v624 = vunpack.c.l.b16 %v592
        %v625 = vunpack.c.l.b16 %v593
        %v626 = vunpack.c.l.b16 %v594
        %v627 = vpack.c.b16 %v612, %v611
        %v628 = vpack.c.b16 %v614, %v613
        %v629 = vpack.c.b16 %v616, %v615
        %v630 = vpack.c.b16 %v618, %v617
        %v631 = vpack.c.b16 %v620, %v619
        %v632 = vpack.c.b16 %v622, %v621
        %v633 = vpack.c.b16 %v624, %v623
        %v634 = vpack.c.b16 %v626, %v625
        %643 = vmatprep.subr.bf16.mxu0 0
        %644 = vmatpush1.bf16.msra.mxu0 %v627
        %645 = vmatprep.subr.bf16.mxu0 0
        %646 = vmatpush1.bf16.msra.mxu0 %v628
        %647 = vmatprep.subr.bf16.mxu0 0
        %648 = vmatpush1.bf16.msra.mxu0 %v629
        %649 = vmatprep.subr.bf16.mxu0 0
        %650 = vmatpush1.bf16.msra.mxu0 %v630
        %651 = vmatprep.subr.bf16.mxu0 0
        %652 = vmatpush1.bf16.msra.mxu0 %v631
        %653 = vmatprep.subr.bf16.mxu0 0
        %654 = vmatpush1.bf16.msra.mxu0 %v632
        %655 = vmatprep.subr.bf16.mxu0 0
        %656 = vmatpush1.bf16.msra.mxu0 %v633
        %657 = vmatprep.subr.bf16.mxu0 0
        %658 = vmatpush1.bf16.msra.mxu0 %v634
        %659 = vmatprep.subr.bf16.mxu0 0
        %660 = vmatpush1.bf16.msra.mxu0 0
        %661 = vmatprep.subr.bf16.mxu0 0
        %662 = vmatpush1.bf16.msra.mxu0 0
        %663 = vmatprep.subr.bf16.mxu0 0
        %664 = vmatpush1.bf16.msra.mxu0 0
        %665 = vmatprep.subr.bf16.mxu0 0
        %666 = vmatpush1.bf16.msra.mxu0 0
        %667 = vmatprep.subr.bf16.mxu0 0
        %668 = vmatpush1.bf16.msra.mxu0 0
        %669 = vmatprep.subr.bf16.mxu0 0
        %670 = vmatpush1.bf16.msra.mxu0 0
        %671 = vmatprep.subr.bf16.mxu0 0
        %672 = vmatpush1.bf16.msra.mxu0 0
        %673 = vmatprep.subr.bf16.mxu0 0
        %674 = vmatpush1.bf16.msra.mxu0 0
        %675 = vmatprep.mubr.bf16.mxu0 0
        %676 = vmatmul.mubr.bf16.gmra.mrb[0].mxu0 %v578
        %v677 = vpop.f32.mrb[0].mxu0
        %v678 = vadd.f32 0.0, %v677
        %v679 = vpop.f32.mrb[0].mxu0
        %v680 = vpop.f32.mrb[0].mxu0
        %v681 = vpop.f32.mrb[0].mxu0
        %682 = vdwg.mxu0
        %v684 = vrot.slane %v678, 1
        %v685 = vrot.slane %v678, 2
        %v686 = vrot.slane %v678, 3
        %v687 = vrot.slane %v678, 4
        %v688 = vrot.slane %v678, 5
        %v689 = vrot.slane %v678, 6
        %v690 = vrot.slane %v678, 7
        %v699 = vadd.f32 %v403, %v678
        %v700 = vadd.f32 %v404, %v684
        %v701 = vadd.f32 %v405, %v685
        %v702 = vadd.f32 %v406, %v686
        %v703 = vadd.f32 %v407, %v687
        %v704 = vadd.f32 %v408, %v688
        %v705 = vadd.f32 %v409, %v689
        %v706 = vadd.f32 %v410, %v690
        %v707 = vld [vmem:[%s351] sm:$0x1]
        %v709 = vlaneseq
        %v710 = vshrl.u32 %v709, 7
        %v711 = vsub.s32 0, %v710
        %v712 = vrot.slane %v707, %v711
        %v714 = vadd.f32 %v699, %v712
        %v715 = vadd.f32 %v700, %v712
        %v716 = vadd.f32 %v701, %v712
        %v717 = vadd.f32 %v702, %v712
        %v718 = vadd.f32 %v703, %v712
        %v719 = vadd.f32 %v704, %v712
        %v720 = vadd.f32 %v705, %v712
        %v721 = vadd.f32 %v706, %v712
        %722 = vst [vmem:[%s397] sm:$0x1] %v714
        %723 = vst [vmem:[%s397 + $0x8] sm:$0x1] %v715
        %724 = vst [vmem:[%s397 + $0x10] sm:$0x1] %v716
        %725 = vst [vmem:[%s397 + $0x18] sm:$0x1] %v717
        %726 = vst [vmem:[%s397 + $0x20] sm:$0x1] %v718
        %727 = vst [vmem:[%s397 + $0x28] sm:$0x1] %v719
        %728 = vst [vmem:[%s397 + $0x30] sm:$0x1] %v720
        %729 = vst [vmem:[%s397 + $0x38] sm:$0x1] %v721
        %s730 = scalar_lea.vmem %s324, 64 [#allocation5]
        %v731 = vld [vmem:[%s730] sm:$0xf]
        %v732 = vld [vmem:[%s730 + $0x4] sm:$0xf]
        %v733 = vld [vmem:[%s730 + $0x8] sm:$0xf]
        %v734 = vld [vmem:[%s730 + $0xc] sm:$0xf]
        %v735 = vld [vmem:[%s730 + $0x10] sm:$0xf]
        %v736 = vld [vmem:[%s730 + $0x14] sm:$0xf]
        %v737 = vld [vmem:[%s730 + $0x18] sm:$0xf]
        %v738 = vld [vmem:[%s730 + $0x1c] sm:$0xf]
        %v739 = vld [vmem:[%s730 + $0x20] sm:$0xf]
        %v740 = vld [vmem:[%s730 + $0x24] sm:$0xf]
        %v741 = vld [vmem:[%s730 + $0x28] sm:$0xf]
        %v742 = vld [vmem:[%s730 + $0x2c] sm:$0xf]
        %v743 = vld [vmem:[%s730 + $0x30] sm:$0xf]
        %v744 = vld [vmem:[%s730 + $0x34] sm:$0xf]
        %v745 = vld [vmem:[%s730 + $0x38] sm:$0xf]
        %v746 = vld [vmem:[%s730 + $0x3c] sm:$0xf]
        %s747 = scalar_lea.vmem %s333, 1 [#allocation7]
        %v748 = vld [vmem:[%s747] sm:$0x1]
        %v750 = vlaneseq
        %v751 = vshrl.u32 %v750, 7
        %v752 = vsub.s32 0, %v751
        %v753 = vrot.slane %v748, %v752
        %v755 = vrot.slane %v458, 1
        %v756 = vsel %vm467, %v459, %v755
        %v757 = vrot.slane %v460, 7
        %v758 = vsel %vm470, %v757, %v756
        %v759 = vrot.slane %v461, 6
        %v760 = vsel %vm473, %v759, %v758
        %v761 = vrot.slane %v462, 5
        %v762 = vsel %vm476, %v761, %v760
        %v763 = vrot.slane %v463, 4
        %v764 = vsel %vm479, %v763, %v762
        %v765 = vrot.slane %v464, 3
        %v766 = vsel %vm482, %v765, %v764
        %v767 = vrot.slane %v465, 2
        %v768 = vsel %vm485, %v767, %v766
        %v769 = vpack.c.b16 %v768, %v768
        %v787 = vunpack.c.l.b16 %v731
        %v788 = vunpack.c.l.b16 %v732
        %v789 = vunpack.c.l.b16 %v733
        %v790 = vunpack.c.l.b16 %v734
        %v791 = vunpack.c.l.b16 %v735
        %v792 = vunpack.c.l.b16 %v736
        %v793 = vunpack.c.l.b16 %v737
        %v794 = vunpack.c.l.b16 %v738
        %v795 = vunpack.c.l.b16 %v739
        %v796 = vunpack.c.l.b16 %v740
        %v797 = vunpack.c.l.b16 %v741
        %v798 = vunpack.c.l.b16 %v742
        %v799 = vunpack.c.l.b16 %v743
        %v800 = vunpack.c.l.b16 %v744
        %v801 = vunpack.c.l.b16 %v745
        %v802 = vunpack.c.l.b16 %v746
        %v803 = vpack.c.b16 %v788, %v787
        %v804 = vpack.c.b16 %v790, %v789
        %v805 = vpack.c.b16 %v792, %v791
        %v806 = vpack.c.b16 %v794, %v793
        %v807 = vpack.c.b16 %v796, %v795
        %v808 = vpack.c.b16 %v798, %v797
        %v809 = vpack.c.b16 %v800, %v799
        %v810 = vpack.c.b16 %v802, %v801
        %819 = vmatprep.subr.bf16.mxu0 0
        %820 = vmatpush1.bf16.msra.mxu0 %v803
        %821 = vmatprep.subr.bf16.mxu0 0
        %822 = vmatpush1.bf16.msra.mxu0 %v804
        %823 = vmatprep.subr.bf16.mxu0 0
        %824 = vmatpush1.bf16.msra.mxu0 %v805
        %825 = vmatprep.subr.bf16.mxu0 0
        %826 = vmatpush1.bf16.msra.mxu0 %v806
        %827 = vmatprep.subr.bf16.mxu0 0
        %828 = vmatpush1.bf16.msra.mxu0 %v807
        %829 = vmatprep.subr.bf16.mxu0 0
        %830 = vmatpush1.bf16.msra.mxu0 %v808
        %831 = vmatprep.subr.bf16.mxu0 0
        %832 = vmatpush1.bf16.msra.mxu0 %v809
        %833 = vmatprep.subr.bf16.mxu0 0
        %834 = vmatpush1.bf16.msra.mxu0 %v810
        %835 = vmatprep.subr.bf16.mxu0 0
        %836 = vmatpush1.bf16.msra.mxu0 0
        %837 = vmatprep.subr.bf16.mxu0 0
        %838 = vmatpush1.bf16.msra.mxu0 0
        %839 = vmatprep.subr.bf16.mxu0 0
        %840 = vmatpush1.bf16.msra.mxu0 0
        %841 = vmatprep.subr.bf16.mxu0 0
        %842 = vmatpush1.bf16.msra.mxu0 0
        %843 = vmatprep.subr.bf16.mxu0 0
        %844 = vmatpush1.bf16.msra.mxu0 0
        %845 = vmatprep.subr.bf16.mxu0 0
        %846 = vmatpush1.bf16.msra.mxu0 0
        %847 = vmatprep.subr.bf16.mxu0 0
        %848 = vmatpush1.bf16.msra.mxu0 0
        %849 = vmatprep.subr.bf16.mxu0 0
        %850 = vmatpush1.bf16.msra.mxu0 0
        %851 = vmatprep.mubr.bf16.mxu0 0
        %852 = vmatmul.mubr.bf16.gmra.mrb[0].mxu0 %v769
        %v853 = vpop.f32.mrb[0].mxu0
        %v854 = vadd.f32 %v753, %v853
        %v855 = vpop.f32.mrb[0].mxu0
        %v856 = vpop.f32.mrb[0].mxu0
        %v857 = vpop.f32.mrb[0].mxu0
        %858 = vdwg.mxu0
        %v859 = vmax.f32 %v854, 0.0
        %v860 = vpack.c.bf16 %v859, %v859
        %s861 = scalar_lea.vmem %s342, 64 [#allocation8]
        %v862 = vld [vmem:[%s861] sm:$0xf]
        %v863 = vld [vmem:[%s861 + $0x4] sm:$0xf]
        %v864 = vld [vmem:[%s861 + $0x8] sm:$0xf]
        %v865 = vld [vmem:[%s861 + $0xc] sm:$0xf]
        %v866 = vld [vmem:[%s861 + $0x10] sm:$0xf]
        %v867 = vld [vmem:[%s861 + $0x14] sm:$0xf]
        %v868 = vld [vmem:[%s861 + $0x18] sm:$0xf]
        %v869 = vld [vmem:[%s861 + $0x1c] sm:$0xf]
        %v870 = vld [vmem:[%s861 + $0x20] sm:$0xf]
        %v871 = vld [vmem:[%s861 + $0x24] sm:$0xf]
        %v872 = vld [vmem:[%s861 + $0x28] sm:$0xf]
        %v873 = vld [vmem:[%s861 + $0x2c] sm:$0xf]
        %v874 = vld [vmem:[%s861 + $0x30] sm:$0xf]
        %v875 = vld [vmem:[%s861 + $0x34] sm:$0xf]
        %v876 = vld [vmem:[%s861 + $0x38] sm:$0xf]
        %v877 = vld [vmem:[%s861 + $0x3c] sm:$0xf]
        %v894 = vunpack.c.l.b16 %v862
        %v895 = vunpack.c.l.b16 %v863
        %v896 = vunpack.c.l.b16 %v864
        %v897 = vunpack.c.l.b16 %v865
        %v898 = vunpack.c.l.b16 %v866
        %v899 = vunpack.c.l.b16 %v867
        %v900 = vunpack.c.l.b16 %v868
        %v901 = vunpack.c.l.b16 %v869
        %v902 = vunpack.c.l.b16 %v870
        %v903 = vunpack.c.l.b16 %v871
        %v904 = vunpack.c.l.b16 %v872
        %v905 = vunpack.c.l.b16 %v873
        %v906 = vunpack.c.l.b16 %v874
        %v907 = vunpack.c.l.b16 %v875
        %v908 = vunpack.c.l.b16 %v876
        %v909 = vunpack.c.l.b16 %v877
        %v910 = vpack.c.b16 %v895, %v894
        %v911 = vpack.c.b16 %v897, %v896
        %v912 = vpack.c.b16 %v899, %v898
        %v913 = vpack.c.b16 %v901, %v900
        %v914 = vpack.c.b16 %v903, %v902
        %v915 = vpack.c.b16 %v905, %v904
        %v916 = vpack.c.b16 %v907, %v906
        %v917 = vpack.c.b16 %v909, %v908
        %926 = vmatprep.subr.bf16.mxu0 0
        %927 = vmatpush1.bf16.msra.mxu0 %v910
        %928 = vmatprep.subr.bf16.mxu0 0
        %929 = vmatpush1.bf16.msra.mxu0 %v911
        %930 = vmatprep.subr.bf16.mxu0 0
        %931 = vmatpush1.bf16.msra.mxu0 %v912
        %932 = vmatprep.subr.bf16.mxu0 0
        %933 = vmatpush1.bf16.msra.mxu0 %v913
        %934 = vmatprep.subr.bf16.mxu0 0
        %935 = vmatpush1.bf16.msra.mxu0 %v914
        %936 = vmatprep.subr.bf16.mxu0 0
        %937 = vmatpush1.bf16.msra.mxu0 %v915
        %938 = vmatprep.subr.bf16.mxu0 0
        %939 = vmatpush1.bf16.msra.mxu0 %v916
        %940 = vmatprep.subr.bf16.mxu0 0
        %941 = vmatpush1.bf16.msra.mxu0 %v917
        %942 = vmatprep.subr.bf16.mxu0 0
        %943 = vmatpush1.bf16.msra.mxu0 0
        %944 = vmatprep.subr.bf16.mxu0 0
        %945 = vmatpush1.bf16.msra.mxu0 0
        %946 = vmatprep.subr.bf16.mxu0 0
        %947 = vmatpush1.bf16.msra.mxu0 0
        %948 = vmatprep.subr.bf16.mxu0 0
        %949 = vmatpush1.bf16.msra.mxu0 0
        %950 = vmatprep.subr.bf16.mxu0 0
        %951 = vmatpush1.bf16.msra.mxu0 0
        %952 = vmatprep.subr.bf16.mxu0 0
        %953 = vmatpush1.bf16.msra.mxu0 0
        %954 = vmatprep.subr.bf16.mxu0 0
        %955 = vmatpush1.bf16.msra.mxu0 0
        %956 = vmatprep.subr.bf16.mxu0 0
        %957 = vmatpush1.bf16.msra.mxu0 0
        %958 = vmatprep.mubr.bf16.mxu0 0
        %959 = vmatmul.mubr.bf16.gmra.mrb[0].mxu0 %v860
        %v960 = vpop.f32.mrb[0].mxu0
        %v961 = vadd.f32 0.0, %v960
        %v962 = vpop.f32.mrb[0].mxu0
        %v963 = vpop.f32.mrb[0].mxu0
        %v964 = vpop.f32.mrb[0].mxu0
        %965 = vdwg.mxu0
        %v967 = vrot.slane %v961, 7
        %v968 = vrot.slane %v961, 1
        %v969 = vrot.slane %v961, 2
        %v970 = vrot.slane %v961, 3
        %v971 = vrot.slane %v961, 4
        %v972 = vrot.slane %v961, 5
        %v973 = vrot.slane %v961, 6
        %v982 = vadd.f32 %v403, %v967
        %v983 = vadd.f32 %v404, %v961
        %v984 = vadd.f32 %v405, %v968
        %v985 = vadd.f32 %v406, %v969
        %v986 = vadd.f32 %v407, %v970
        %v987 = vadd.f32 %v408, %v971
        %v988 = vadd.f32 %v409, %v972
        %v989 = vadd.f32 %v410, %v973
        %s990 = scalar_lea.vmem %s351, 1 [#allocation10]
        %v991 = vld [vmem:[%s990] sm:$0x1]
        %v993 = vlaneseq
        %v994 = vshrl.u32 %v993, 7
        %v995 = vsub.s32 0, %v994
        %v996 = vrot.slane %v991, %v995
        %v998 = vadd.f32 %v982, %v996
        %v999 = vadd.f32 %v983, %v996
        %v1000 = vadd.f32 %v984, %v996
        %v1001 = vadd.f32 %v985, %v996
        %v1002 = vadd.f32 %v986, %v996
        %v1003 = vadd.f32 %v987, %v996
        %v1004 = vadd.f32 %v988, %v996
        %v1005 = vadd.f32 %v989, %v996
        %1006 = vst [vmem:[%s397] sm:$0x2] %v998
        %1007 = vst [vmem:[%s397 + $0x8] sm:$0x2] %v999
        %1008 = vst [vmem:[%s397 + $0x10] sm:$0x2] %v1000
        %1009 = vst [vmem:[%s397 + $0x18] sm:$0x2] %v1001
        %1010 = vst [vmem:[%s397 + $0x20] sm:$0x2] %v1002
        %1011 = vst [vmem:[%s397 + $0x28] sm:$0x2] %v1003
        %1012 = vst [vmem:[%s397 + $0x30] sm:$0x2] %v1004
        %1013 = vst [vmem:[%s397 + $0x38] sm:$0x2] %v1005
        %s1014 = scalar_lea.vmem %s324, 128 [#allocation5]
        %v1015 = vld [vmem:[%s1014] sm:$0xf]
        %v1016 = vld [vmem:[%s1014 + $0x4] sm:$0xf]
        %v1017 = vld [vmem:[%s1014 + $0x8] sm:$0xf]
        %v1018 = vld [vmem:[%s1014 + $0xc] sm:$0xf]
        %v1019 = vld [vmem:[%s1014 + $0x10] sm:$0xf]
        %v1020 = vld [vmem:[%s1014 + $0x14] sm:$0xf]
        %v1021 = vld [vmem:[%s1014 + $0x18] sm:$0xf]
        %v1022 = vld [vmem:[%s1014 + $0x1c] sm:$0xf]
        %v1023 = vld [vmem:[%s1014 + $0x20] sm:$0xf]
        %v1024 = vld [vmem:[%s1014 + $0x24] sm:$0xf]
        %v1025 = vld [vmem:[%s1014 + $0x28] sm:$0xf]
        %v1026 = vld [vmem:[%s1014 + $0x2c] sm:$0xf]
        %v1027 = vld [vmem:[%s1014 + $0x30] sm:$0xf]
        %v1028 = vld [vmem:[%s1014 + $0x34] sm:$0xf]
        %v1029 = vld [vmem:[%s1014 + $0x38] sm:$0xf]
        %v1030 = vld [vmem:[%s1014 + $0x3c] sm:$0xf]
        %s1031 = scalar_lea.vmem %s333, 2 [#allocation7]
        %v1032 = vld [vmem:[%s1031] sm:$0x1]
        %v1034 = vlaneseq
        %v1035 = vshrl.u32 %v1034, 7
        %v1036 = vsub.s32 0, %v1035
        %v1037 = vrot.slane %v1032, %v1036
        %v1039 = vrot.slane %v458, 2
        %v1040 = vrot.slane %v459, 1
        %v1041 = vsel %vm467, %v1040, %v1039
        %v1042 = vsel %vm470, %v460, %v1041
        %v1043 = vrot.slane %v461, 7
        %v1044 = vsel %vm473, %v1043, %v1042
        %v1045 = vrot.slane %v462, 6
        %v1046 = vsel %vm476, %v1045, %v1044
        %v1047 = vrot.slane %v463, 5
        %v1048 = vsel %vm479, %v1047, %v1046
        %v1049 = vrot.slane %v464, 4
        %v1050 = vsel %vm482, %v1049, %v1048
        %v1051 = vrot.slane %v465, 3
        %v1052 = vsel %vm485, %v1051, %v1050
        %v1053 = vpack.c.b16 %v1052, %v1052
        %v1071 = vunpack.c.l.b16 %v1015
        %v1072 = vunpack.c.l.b16 %v1016
        %v1073 = vunpack.c.l.b16 %v1017
        %v1074 = vunpack.c.l.b16 %v1018
        %v1075 = vunpack.c.l.b16 %v1019
        %v1076 = vunpack.c.l.b16 %v1020
        %v1077 = vunpack.c.l.b16 %v1021
        %v1078 = vunpack.c.l.b16 %v1022
        %v1079 = vunpack.c.l.b16 %v1023
        %v1080 = vunpack.c.l.b16 %v1024
        %v1081 = vunpack.c.l.b16 %v1025
        %v1082 = vunpack.c.l.b16 %v1026
        %v1083 = vunpack.c.l.b16 %v1027
        %v1084 = vunpack.c.l.b16 %v1028
        %v1085 = vunpack.c.l.b16 %v1029
        %v1086 = vunpack.c.l.b16 %v1030
        %v1087 = vpack.c.b16 %v1072, %v1071
        %v1088 = vpack.c.b16 %v1074, %v1073
        %v1089 = vpack.c.b16 %v1076, %v1075
        %v1090 = vpack.c.b16 %v1078, %v1077
        %v1091 = vpack.c.b16 %v1080, %v1079
        %v1092 = vpack.c.b16 %v1082, %v1081
        %v1093 = vpack.c.b16 %v1084, %v1083
        %v1094 = vpack.c.b16 %v1086, %v1085
        %1103 = vmatprep.subr.bf16.mxu0 0
        %1104 = vmatpush1.bf16.msra.mxu0 %v1087
        %1105 = vmatprep.subr.bf16.mxu0 0
        %1106 = vmatpush1.bf16.msra.mxu0 %v1088
        %1107 = vmatprep.subr.bf16.mxu0 0
        %1108 = vmatpush1.bf16.msra.mxu0 %v1089
        %1109 = vmatprep.subr.bf16.mxu0 0
        %1110 = vmatpush1.bf16.msra.mxu0 %v1090
        %1111 = vmatprep.subr.bf16.mxu0 0
        %1112 = vmatpush1.bf16.msra.mxu0 %v1091
        %1113 = vmatprep.subr.bf16.mxu0 0
        %1114 = vmatpush1.bf16.msra.mxu0 %v1092
        %1115 = vmatprep.subr.bf16.mxu0 0
        %1116 = vmatpush1.bf16.msra.mxu0 %v1093
        %1117 = vmatprep.subr.bf16.mxu0 0
        %1118 = vmatpush1.bf16.msra.mxu0 %v1094
        %1119 = vmatprep.subr.bf16.mxu0 0
        %1120 = vmatpush1.bf16.msra.mxu0 0
        %1121 = vmatprep.subr.bf16.mxu0 0
        %1122 = vmatpush1.bf16.msra.mxu0 0
        %1123 = vmatprep.subr.bf16.mxu0 0
        %1124 = vmatpush1.bf16.msra.mxu0 0
        %1125 = vmatprep.subr.bf16.mxu0 0
        %1126 = vmatpush1.bf16.msra.mxu0 0
        %1127 = vmatprep.subr.bf16.mxu0 0
        %1128 = vmatpush1.bf16.msra.mxu0 0
        %1129 = vmatprep.subr.bf16.mxu0 0
        %1130 = vmatpush1.bf16.msra.mxu0 0
        %1131 = vmatprep.subr.bf16.mxu0 0
        %1132 = vmatpush1.bf16.msra.mxu0 0
        %1133 = vmatprep.subr.bf16.mxu0 0
        %1134 = vmatpush1.bf16.msra.mxu0 0
        %1135 = vmatprep.mubr.bf16.mxu0 0
        %1136 = vmatmul.mubr.bf16.gmra.mrb[0].mxu0 %v1053
        %v1137 = vpop.f32.mrb[0].mxu0
        %v1138 = vadd.f32 %v1037, %v1137
        %v1139 = vpop.f32.mrb[0].mxu0
        %v1140 = vpop.f32.mrb[0].mxu0
        %v1141 = vpop.f32.mrb[0].mxu0
        %1142 = vdwg.mxu0
        %v1143 = vmax.f32 %v1138, 0.0
        %v1144 = vpack.c.bf16 %v1143, %v1143
        %s1145 = scalar_lea.vmem %s342, 128 [#allocation8]
        %v1146 = vld [vmem:[%s1145] sm:$0xf]
        %v1147 = vld [vmem:[%s1145 + $0x4] sm:$0xf]
        %v1148 = vld [vmem:[%s1145 + $0x8] sm:$0xf]
        %v1149 = vld [vmem:[%s1145 + $0xc] sm:$0xf]
        %v1150 = vld [vmem:[%s1145 + $0x10] sm:$0xf]
        %v1151 = vld [vmem:[%s1145 + $0x14] sm:$0xf]
        %v1152 = vld [vmem:[%s1145 + $0x18] sm:$0xf]
        %v1153 = vld [vmem:[%s1145 + $0x1c] sm:$0xf]
        %v1154 = vld [vmem:[%s1145 + $0x20] sm:$0xf]
        %v1155 = vld [vmem:[%s1145 + $0x24] sm:$0xf]
        %v1156 = vld [vmem:[%s1145 + $0x28] sm:$0xf]
        %v1157 = vld [vmem:[%s1145 + $0x2c] sm:$0xf]
        %v1158 = vld [vmem:[%s1145 + $0x30] sm:$0xf]
        %v1159 = vld [vmem:[%s1145 + $0x34] sm:$0xf]
        %v1160 = vld [vmem:[%s1145 + $0x38] sm:$0xf]
        %v1161 = vld [vmem:[%s1145 + $0x3c] sm:$0xf]
        %v1178 = vunpack.c.l.b16 %v1146
        %v1179 = vunpack.c.l.b16 %v1147
        %v1180 = vunpack.c.l.b16 %v1148
        %v1181 = vunpack.c.l.b16 %v1149
        %v1182 = vunpack.c.l.b16 %v1150
        %v1183 = vunpack.c.l.b16 %v1151
        %v1184 = vunpack.c.l.b16 %v1152
        %v1185 = vunpack.c.l.b16 %v1153
        %v1186 = vunpack.c.l.b16 %v1154
        %v1187 = vunpack.c.l.b16 %v1155
        %v1188 = vunpack.c.l.b16 %v1156
        %v1189 = vunpack.c.l.b16 %v1157
        %v1190 = vunpack.c.l.b16 %v1158
        %v1191 = vunpack.c.l.b16 %v1159
        %v1192 = vunpack.c.l.b16 %v1160
        %v1193 = vunpack.c.l.b16 %v1161
        %v1194 = vpack.c.b16 %v1179, %v1178
        %v1195 = vpack.c.b16 %v1181, %v1180
        %v1196 = vpack.c.b16 %v1183, %v1182
        %v1197 = vpack.c.b16 %v1185, %v1184
        %v1198 = vpack.c.b16 %v1187, %v1186
        %v1199 = vpack.c.b16 %v1189, %v1188
        %v1200 = vpack.c.b16 %v1191, %v1190
        %v1201 = vpack.c.b16 %v1193, %v1192
        %1210 = vmatprep.subr.bf16.mxu0 0
        %1211 = vmatpush1.bf16.msra.mxu0 %v1194
        %1212 = vmatprep.subr.bf16.mxu0 0
        %1213 = vmatpush1.bf16.msra.mxu0 %v1195
        %1214 = vmatprep.subr.bf16.mxu0 0
        %1215 = vmatpush1.bf16.msra.mxu0 %v1196
        %1216 = vmatprep.subr.bf16.mxu0 0
        %1217 = vmatpush1.bf16.msra.mxu0 %v1197
        %1218 = vmatprep.subr.bf16.mxu0 0
        %1219 = vmatpush1.bf16.msra.mxu0 %v1198
        %1220 = vmatprep.subr.bf16.mxu0 0
        %1221 = vmatpush1.bf16.msra.mxu0 %v1199
        %1222 = vmatprep.subr.bf16.mxu0 0
        %1223 = vmatpush1.bf16.msra.mxu0 %v1200
        %1224 = vmatprep.subr.bf16.mxu0 0
        %1225 = vmatpush1.bf16.msra.mxu0 %v1201
        %1226 = vmatprep.subr.bf16.mxu0 0
        %1227 = vmatpush1.bf16.msra.mxu0 0
        %1228 = vmatprep.subr.bf16.mxu0 0
        %1229 = vmatpush1.bf16.msra.mxu0 0
        %1230 = vmatprep.subr.bf16.mxu0 0
        %1231 = vmatpush1.bf16.msra.mxu0 0
        %1232 = vmatprep.subr.bf16.mxu0 0
        %1233 = vmatpush1.bf16.msra.mxu0 0
        %1234 = vmatprep.subr.bf16.mxu0 0
        %1235 = vmatpush1.bf16.msra.mxu0 0
        %1236 = vmatprep.subr.bf16.mxu0 0
        %1237 = vmatpush1.bf16.msra.mxu0 0
        %1238 = vmatprep.subr.bf16.mxu0 0
        %1239 = vmatpush1.bf16.msra.mxu0 0
        %1240 = vmatprep.subr.bf16.mxu0 0
        %1241 = vmatpush1.bf16.msra.mxu0 0
        %1242 = vmatprep.mubr.bf16.mxu0 0
        %1243 = vmatmul.mubr.bf16.gmra.mrb[0].mxu0 %v1144
        %v1244 = vpop.f32.mrb[0].mxu0
        %v1245 = vadd.f32 0.0, %v1244
        %v1246 = vpop.f32.mrb[0].mxu0
        %v1247 = vpop.f32.mrb[0].mxu0
        %v1248 = vpop.f32.mrb[0].mxu0
        %1249 = vdwg.mxu0
        %v1251 = vrot.slane %v1245, 6
        %v1252 = vrot.slane %v1245, 7
        %v1253 = vrot.slane %v1245, 1
        %v1254 = vrot.slane %v1245, 2
        %v1255 = vrot.slane %v1245, 3
        %v1256 = vrot.slane %v1245, 4
        %v1257 = vrot.slane %v1245, 5
        %v1266 = vadd.f32 %v403, %v1251
        %v1267 = vadd.f32 %v404, %v1252
        %v1268 = vadd.f32 %v405, %v1245
        %v1269 = vadd.f32 %v406, %v1253
        %v1270 = vadd.f32 %v407, %v1254
        %v1271 = vadd.f32 %v408, %v1255
        %v1272 = vadd.f32 %v409, %v1256
        %v1273 = vadd.f32 %v410, %v1257
        %s1274 = scalar_lea.vmem %s351, 2 [#allocation10]
        %v1275 = vld [vmem:[%s1274] sm:$0x1]
        %v1277 = vlaneseq
        %v1278 = vshrl.u32 %v1277, 7
        %v1279 = vsub.s32 0, %v1278
        %v1280 = vrot.slane %v1275, %v1279
        %v1282 = vadd.f32 %v1266, %v1280
        %v1283 = vadd.f32 %v1267, %v1280
        %v1284 = vadd.f32 %v1268, %v1280
        %v1285 = vadd.f32 %v1269, %v1280
        %v1286 = vadd.f32 %v1270, %v1280
        %v1287 = vadd.f32 %v1271, %v1280
        %v1288 = vadd.f32 %v1272, %v1280
        %v1289 = vadd.f32 %v1273, %v1280
        %1290 = vst [vmem:[%s397] sm:$0x4] %v1282
        %1291 = vst [vmem:[%s397 + $0x8] sm:$0x4] %v1283
        %1292 = vst [vmem:[%s397 + $0x10] sm:$0x4] %v1284
        %1293 = vst [vmem:[%s397 + $0x18] sm:$0x4] %v1285
        %1294 = vst [vmem:[%s397 + $0x20] sm:$0x4] %v1286
        %1295 = vst [vmem:[%s397 + $0x28] sm:$0x4] %v1287
        %1296 = vst [vmem:[%s397 + $0x30] sm:$0x4] %v1288
        %1297 = vst [vmem:[%s397 + $0x38] sm:$0x4] %v1289
        %s1298 = scalar_lea.vmem %s324, 192 [#allocation5]
        %v1299 = vld [vmem:[%s1298] sm:$0xf]
        %v1300 = vld [vmem:[%s1298 + $0x4] sm:$0xf]
        %v1301 = vld [vmem:[%s1298 + $0x8] sm:$0xf]
        %v1302 = vld [vmem:[%s1298 + $0xc] sm:$0xf]
        %v1303 = vld [vmem:[%s1298 + $0x10] sm:$0xf]
        %v1304 = vld [vmem:[%s1298 + $0x14] sm:$0xf]
        %v1305 = vld [vmem:[%s1298 + $0x18] sm:$0xf]
        %v1306 = vld [vmem:[%s1298 + $0x1c] sm:$0xf]
        %v1307 = vld [vmem:[%s1298 + $0x20] sm:$0xf]
        %v1308 = vld [vmem:[%s1298 + $0x24] sm:$0xf]
        %v1309 = vld [vmem:[%s1298 + $0x28] sm:$0xf]
        %v1310 = vld [vmem:[%s1298 + $0x2c] sm:$0xf]
        %v1311 = vld [vmem:[%s1298 + $0x30] sm:$0xf]
        %v1312 = vld [vmem:[%s1298 + $0x34] sm:$0xf]
        %v1313 = vld [vmem:[%s1298 + $0x38] sm:$0xf]
        %v1314 = vld [vmem:[%s1298 + $0x3c] sm:$0xf]
        %s1315 = scalar_lea.vmem %s333, 3 [#allocation7]
        %v1316 = vld [vmem:[%s1315] sm:$0x1]
        %v1318 = vlaneseq
        %v1319 = vshrl.u32 %v1318, 7
        %v1320 = vsub.s32 0, %v1319
        %v1321 = vrot.slane %v1316, %v1320
        %v1323 = vrot.slane %v458, 3
        %v1324 = vrot.slane %v459, 2
        %v1325 = vsel %vm467, %v1324, %v1323
        %v1326 = vrot.slane %v460, 1
        %v1327 = vsel %vm470, %v1326, %v1325
        %v1328 = vsel %vm473, %v461, %v1327
        %v1329 = vrot.slane %v462, 7
        %v1330 = vsel %vm476, %v1329, %v1328
        %v1331 = vrot.slane %v463, 6
        %v1332 = vsel %vm479, %v1331, %v1330
        %v1333 = vrot.slane %v464, 5
        %v1334 = vsel %vm482, %v1333, %v1332
        %v1335 = vrot.slane %v465, 4
        %v1336 = vsel %vm485, %v1335, %v1334
        %v1337 = vpack.c.b16 %v1336, %v1336
        %v1355 = vunpack.c.l.b16 %v1299
        %v1356 = vunpack.c.l.b16 %v1300
        %v1357 = vunpack.c.l.b16 %v1301
        %v1358 = vunpack.c.l.b16 %v1302
        %v1359 = vunpack.c.l.b16 %v1303
        %v1360 = vunpack.c.l.b16 %v1304
        %v1361 = vunpack.c.l.b16 %v1305
        %v1362 = vunpack.c.l.b16 %v1306
        %v1363 = vunpack.c.l.b16 %v1307
        %v1364 = vunpack.c.l.b16 %v1308
        %v1365 = vunpack.c.l.b16 %v1309
        %v1366 = vunpack.c.l.b16 %v1310
        %v1367 = vunpack.c.l.b16 %v1311
        %v1368 = vunpack.c.l.b16 %v1312
        %v1369 = vunpack.c.l.b16 %v1313
        %v1370 = vunpack.c.l.b16 %v1314
        %v1371 = vpack.c.b16 %v1356, %v1355
        %v1372 = vpack.c.b16 %v1358, %v1357
        %v1373 = vpack.c.b16 %v1360, %v1359
        %v1374 = vpack.c.b16 %v1362, %v1361
        %v1375 = vpack.c.b16 %v1364, %v1363
        %v1376 = vpack.c.b16 %v1366, %v1365
        %v1377 = vpack.c.b16 %v1368, %v1367
        %v1378 = vpack.c.b16 %v1370, %v1369
        %1387 = vmatprep.subr.bf16.mxu0 0
        %1388 = vmatpush1.bf16.msra.mxu0 %v1371
        %1389 = vmatprep.subr.bf16.mxu0 0
        %1390 = vmatpush1.bf16.msra.mxu0 %v1372
        %1391 = vmatprep.subr.bf16.mxu0 0
        %1392 = vmatpush1.bf16.msra.mxu0 %v1373
        %1393 = vmatprep.subr.bf16.mxu0 0
        %1394 = vmatpush1.bf16.msra.mxu0 %v1374
        %1395 = vmatprep.subr.bf16.mxu0 0
        %1396 = vmatpush1.bf16.msra.mxu0 %v1375
        %1397 = vmatprep.subr.bf16.mxu0 0
        %1398 = vmatpush1.bf16.msra.mxu0 %v1376
        %1399 = vmatprep.subr.bf16.mxu0 0
        %1400 = vmatpush1.bf16.msra.mxu0 %v1377
        %1401 = vmatprep.subr.bf16.mxu0 0
        %1402 = vmatpush1.bf16.msra.mxu0 %v1378
        %1403 = vmatprep.subr.bf16.mxu0 0
        %1404 = vmatpush1.bf16.msra.mxu0 0
        %1405 = vmatprep.subr.bf16.mxu0 0
        %1406 = vmatpush1.bf16.msra.mxu0 0
        %1407 = vmatprep.subr.bf16.mxu0 0
        %1408 = vmatpush1.bf16.msra.mxu0 0
        %1409 = vmatprep.subr.bf16.mxu0 0
        %1410 = vmatpush1.bf16.msra.mxu0 0
        %1411 = vmatprep.subr.bf16.mxu0 0
        %1412 = vmatpush1.bf16.msra.mxu0 0
        %1413 = vmatprep.subr.bf16.mxu0 0
        %1414 = vmatpush1.bf16.msra.mxu0 0
        %1415 = vmatprep.subr.bf16.mxu0 0
        %1416 = vmatpush1.bf16.msra.mxu0 0
        %1417 = vmatprep.subr.bf16.mxu0 0
        %1418 = vmatpush1.bf16.msra.mxu0 0
        %1419 = vmatprep.mubr.bf16.mxu0 0
        %1420 = vmatmul.mubr.bf16.gmra.mrb[0].mxu0 %v1337
        %v1421 = vpop.f32.mrb[0].mxu0
        %v1422 = vadd.f32 %v1321, %v1421
        %v1423 = vpop.f32.mrb[0].mxu0
        %v1424 = vpop.f32.mrb[0].mxu0
        %v1425 = vpop.f32.mrb[0].mxu0
        %1426 = vdwg.mxu0
        %v1427 = vmax.f32 %v1422, 0.0
        %v1428 = vpack.c.bf16 %v1427, %v1427
        %s1429 = scalar_lea.vmem %s342, 192 [#allocation8]
        %v1430 = vld [vmem:[%s1429] sm:$0xf]
        %v1431 = vld [vmem:[%s1429 + $0x4] sm:$0xf]
        %v1432 = vld [vmem:[%s1429 + $0x8] sm:$0xf]
        %v1433 = vld [vmem:[%s1429 + $0xc] sm:$0xf]
        %v1434 = vld [vmem:[%s1429 + $0x10] sm:$0xf]
        %v1435 = vld [vmem:[%s1429 + $0x14] sm:$0xf]
        %v1436 = vld [vmem:[%s1429 + $0x18] sm:$0xf]
        %v1437 = vld [vmem:[%s1429 + $0x1c] sm:$0xf]
        %v1438 = vld [vmem:[%s1429 + $0x20] sm:$0xf]
        %v1439 = vld [vmem:[%s1429 + $0x24] sm:$0xf]
        %v1440 = vld [vmem:[%s1429 + $0x28] sm:$0xf]
        %v1441 = vld [vmem:[%s1429 + $0x2c] sm:$0xf]
        %v1442 = vld [vmem:[%s1429 + $0x30] sm:$0xf]
        %v1443 = vld [vmem:[%s1429 + $0x34] sm:$0xf]
        %v1444 = vld [vmem:[%s1429 + $0x38] sm:$0xf]
        %v1445 = vld [vmem:[%s1429 + $0x3c] sm:$0xf]
        %v1462 = vunpack.c.l.b16 %v1430
        %v1463 = vunpack.c.l.b16 %v1431
        %v1464 = vunpack.c.l.b16 %v1432
        %v1465 = vunpack.c.l.b16 %v1433
        %v1466 = vunpack.c.l.b16 %v1434
        %v1467 = vunpack.c.l.b16 %v1435
        %v1468 = vunpack.c.l.b16 %v1436
        %v1469 = vunpack.c.l.b16 %v1437
        %v1470 = vunpack.c.l.b16 %v1438
        %v1471 = vunpack.c.l.b16 %v1439
        %v1472 = vunpack.c.l.b16 %v1440
        %v1473 = vunpack.c.l.b16 %v1441
        %v1474 = vunpack.c.l.b16 %v1442
        %v1475 = vunpack.c.l.b16 %v1443
        %v1476 = vunpack.c.l.b16 %v1444
        %v1477 = vunpack.c.l.b16 %v1445
        %v1478 = vpack.c.b16 %v1463, %v1462
        %v1479 = vpack.c.b16 %v1465, %v1464
        %v1480 = vpack.c.b16 %v1467, %v1466
        %v1481 = vpack.c.b16 %v1469, %v1468
        %v1482 = vpack.c.b16 %v1471, %v1470
        %v1483 = vpack.c.b16 %v1473, %v1472
        %v1484 = vpack.c.b16 %v1475, %v1474
        %v1485 = vpack.c.b16 %v1477, %v1476
        %1494 = vmatprep.subr.bf16.mxu0 0
        %1495 = vmatpush1.bf16.msra.mxu0 %v1478
        %1496 = vmatprep.subr.bf16.mxu0 0
        %1497 = vmatpush1.bf16.msra.mxu0 %v1479
        %1498 = vmatprep.subr.bf16.mxu0 0
        %1499 = vmatpush1.bf16.msra.mxu0 %v1480
        %1500 = vmatprep.subr.bf16.mxu0 0
        %1501 = vmatpush1.bf16.msra.mxu0 %v1481
        %1502 = vmatprep.subr.bf16.mxu0 0
        %1503 = vmatpush1.bf16.msra.mxu0 %v1482
        %1504 = vmatprep.subr.bf16.mxu0 0
        %1505 = vmatpush1.bf16.msra.mxu0 %v1483
        %1506 = vmatprep.subr.bf16.mxu0 0
        %1507 = vmatpush1.bf16.msra.mxu0 %v1484
        %1508 = vmatprep.subr.bf16.mxu0 0
        %1509 = vmatpush1.bf16.msra.mxu0 %v1485
        %1510 = vmatprep.subr.bf16.mxu0 0
        %1511 = vmatpush1.bf16.msra.mxu0 0
        %1512 = vmatprep.subr.bf16.mxu0 0
        %1513 = vmatpush1.bf16.msra.mxu0 0
        %1514 = vmatprep.subr.bf16.mxu0 0
        %1515 = vmatpush1.bf16.msra.mxu0 0
        %1516 = vmatprep.subr.bf16.mxu0 0
        %1517 = vmatpush1.bf16.msra.mxu0 0
        %1518 = vmatprep.subr.bf16.mxu0 0
        %1519 = vmatpush1.bf16.msra.mxu0 0
        %1520 = vmatprep.subr.bf16.mxu0 0
        %1521 = vmatpush1.bf16.msra.mxu0 0
        %1522 = vmatprep.subr.bf16.mxu0 0
        %1523 = vmatpush1.bf16.msra.mxu0 0
        %1524 = vmatprep.subr.bf16.mxu0 0
        %1525 = vmatpush1.bf16.msra.mxu0 0
        %1526 = vmatprep.mubr.bf16.mxu0 0
        %1527 = vmatmul.mubr.bf16.gmra.mrb[0].mxu0 %v1428
        %v1528 = vpop.f32.mrb[0].mxu0
        %v1529 = vadd.f32 0.0, %v1528
        %v1530 = vpop.f32.mrb[0].mxu0
        %v1531 = vpop.f32.mrb[0].mxu0
        %v1532 = vpop.f32.mrb[0].mxu0
        %1533 = vdwg.mxu0
        %v1535 = vrot.slane %v1529, 5
        %v1536 = vrot.slane %v1529, 6
        %v1537 = vrot.slane %v1529, 7
        %v1538 = vrot.slane %v1529, 1
        %v1539 = vrot.slane %v1529, 2
        %v1540 = vrot.slane %v1529, 3
        %v1541 = vrot.slane %v1529, 4
        %v1550 = vadd.f32 %v403, %v1535
        %v1551 = vadd.f32 %v404, %v1536
        %v1552 = vadd.f32 %v405, %v1537
        %v1553 = vadd.f32 %v406, %v1529
        %v1554 = vadd.f32 %v407, %v1538
        %v1555 = vadd.f32 %v408, %v1539
        %v1556 = vadd.f32 %v409, %v1540
        %v1557 = vadd.f32 %v410, %v1541
        %s1558 = scalar_lea.vmem %s351, 3 [#allocation10]
        %v1559 = vld [vmem:[%s1558] sm:$0x1]
        %v1561 = vlaneseq
        %v1562 = vshrl.u32 %v1561, 7
        %v1563 = vsub.s32 0, %v1562
        %v1564 = vrot.slane %v1559, %v1563
        %v1566 = vadd.f32 %v1550, %v1564
        %v1567 = vadd.f32 %v1551, %v1564
        %v1568 = vadd.f32 %v1552, %v1564
        %v1569 = vadd.f32 %v1553, %v1564
        %v1570 = vadd.f32 %v1554, %v1564
        %v1571 = vadd.f32 %v1555, %v1564
        %v1572 = vadd.f32 %v1556, %v1564
        %v1573 = vadd.f32 %v1557, %v1564
        %1574 = vst [vmem:[%s397] sm:$0x8] %v1566
        %1575 = vst [vmem:[%s397 + $0x8] sm:$0x8] %v1567
        %1576 = vst [vmem:[%s397 + $0x10] sm:$0x8] %v1568
        %1577 = vst [vmem:[%s397 + $0x18] sm:$0x8] %v1569
        %1578 = vst [vmem:[%s397 + $0x20] sm:$0x8] %v1570
        %1579 = vst [vmem:[%s397 + $0x28] sm:$0x8] %v1571
        %1580 = vst [vmem:[%s397 + $0x30] sm:$0x8] %v1572
        %1581 = vst [vmem:[%s397 + $0x38] sm:$0x8] %v1573
        %s1582 = scalar_lea.vmem %s324, 256 [#allocation5]
        %v1583 = vld [vmem:[%s1582] sm:$0xf]
        %v1584 = vld [vmem:[%s1582 + $0x4] sm:$0xf]
        %v1585 = vld [vmem:[%s1582 + $0x8] sm:$0xf]
        %v1586 = vld [vmem:[%s1582 + $0xc] sm:$0xf]
        %v1587 = vld [vmem:[%s1582 + $0x10] sm:$0xf]
        %v1588 = vld [vmem:[%s1582 + $0x14] sm:$0xf]
        %v1589 = vld [vmem:[%s1582 + $0x18] sm:$0xf]
        %v1590 = vld [vmem:[%s1582 + $0x1c] sm:$0xf]
        %v1591 = vld [vmem:[%s1582 + $0x20] sm:$0xf]
        %v1592 = vld [vmem:[%s1582 + $0x24] sm:$0xf]
        %v1593 = vld [vmem:[%s1582 + $0x28] sm:$0xf]
        %v1594 = vld [vmem:[%s1582 + $0x2c] sm:$0xf]
        %v1595 = vld [vmem:[%s1582 + $0x30] sm:$0xf]
        %v1596 = vld [vmem:[%s1582 + $0x34] sm:$0xf]
        %v1597 = vld [vmem:[%s1582 + $0x38] sm:$0xf]
        %v1598 = vld [vmem:[%s1582 + $0x3c] sm:$0xf]
        %s1599 = scalar_lea.vmem %s333, 4 [#allocation7]
        %v1600 = vld [vmem:[%s1599] sm:$0x1]
        %v1602 = vlaneseq
        %v1603 = vshrl.u32 %v1602, 7
        %v1604 = vsub.s32 0, %v1603
        %v1605 = vrot.slane %v1600, %v1604
        %v1607 = vrot.slane %v458, 4
        %v1608 = vrot.slane %v459, 3
        %v1609 = vsel %vm467, %v1608, %v1607
        %v1610 = vrot.slane %v460, 2
        %v1611 = vsel %vm470, %v1610, %v1609
        %v1612 = vrot.slane %v461, 1
        %v1613 = vsel %vm473, %v1612, %v1611
        %v1614 = vsel %vm476, %v462, %v1613
        %v1615 = vrot.slane %v463, 7
        %v1616 = vsel %vm479, %v1615, %v1614
        %v1617 = vrot.slane %v464, 6
        %v1618 = vsel %vm482, %v1617, %v1616
        %v1619 = vrot.slane %v465, 5
        %v1620 = vsel %vm485, %v1619, %v1618
        %v1621 = vpack.c.b16 %v1620, %v1620
        %v1639 = vunpack.c.l.b16 %v1583
        %v1640 = vunpack.c.l.b16 %v1584
        %v1641 = vunpack.c.l.b16 %v1585
        %v1642 = vunpack.c.l.b16 %v1586
        %v1643 = vunpack.c.l.b16 %v1587
        %v1644 = vunpack.c.l.b16 %v1588
        %v1645 = vunpack.c.l.b16 %v1589
        %v1646 = vunpack.c.l.b16 %v1590
        %v1647 = vunpack.c.l.b16 %v1591
        %v1648 = vunpack.c.l.b16 %v1592
        %v1649 = vunpack.c.l.b16 %v1593
        %v1650 = vunpack.c.l.b16 %v1594
        %v1651 = vunpack.c.l.b16 %v1595
        %v1652 = vunpack.c.l.b16 %v1596
        %v1653 = vunpack.c.l.b16 %v1597
        %v1654 = vunpack.c.l.b16 %v1598
        %v1655 = vpack.c.b16 %v1640, %v1639
        %v1656 = vpack.c.b16 %v1642, %v1641
        %v1657 = vpack.c.b16 %v1644, %v1643
        %v1658 = vpack.c.b16 %v1646, %v1645
        %v1659 = vpack.c.b16 %v1648, %v1647
        %v1660 = vpack.c.b16 %v1650, %v1649
        %v1661 = vpack.c.b16 %v1652, %v1651
        %v1662 = vpack.c.b16 %v1654, %v1653
        %1671 = vmatprep.subr.bf16.mxu0 0
        %1672 = vmatpush1.bf16.msra.mxu0 %v1655
        %1673 = vmatprep.subr.bf16.mxu0 0
        %1674 = vmatpush1.bf16.msra.mxu0 %v1656
        %1675 = vmatprep.subr.bf16.mxu0 0
        %1676 = vmatpush1.bf16.msra.mxu0 %v1657
        %1677 = vmatprep.subr.bf16.mxu0 0
        %1678 = vmatpush1.bf16.msra.mxu0 %v1658
        %1679 = vmatprep.subr.bf16.mxu0 0
        %1680 = vmatpush1.bf16.msra.mxu0 %v1659
        %1681 = vmatprep.subr.bf16.mxu0 0
        %1682 = vmatpush1.bf16.msra.mxu0 %v1660
        %1683 = vmatprep.subr.bf16.mxu0 0
        %1684 = vmatpush1.bf16.msra.mxu0 %v1661
        %1685 = vmatprep.subr.bf16.mxu0 0
        %1686 = vmatpush1.bf16.msra.mxu0 %v1662
        %1687 = vmatprep.subr.bf16.mxu0 0
        %1688 = vmatpush1.bf16.msra.mxu0 0
        %1689 = vmatprep.subr.bf16.mxu0 0
        %1690 = vmatpush1.bf16.msra.mxu0 0
        %1691 = vmatprep.subr.bf16.mxu0 0
        %1692 = vmatpush1.bf16.msra.mxu0 0
        %1693 = vmatprep.subr.bf16.mxu0 0
        %1694 = vmatpush1.bf16.msra.mxu0 0
        %1695 = vmatprep.subr.bf16.mxu0 0
        %1696 = vmatpush1.bf16.msra.mxu0 0
        %1697 = vmatprep.subr.bf16.mxu0 0
        %1698 = vmatpush1.bf16.msra.mxu0 0
        %1699 = vmatprep.subr.bf16.mxu0 0
        %1700 = vmatpush1.bf16.msra.mxu0 0
        %1701 = vmatprep.subr.bf16.mxu0 0
        %1702 = vmatpush1.bf16.msra.mxu0 0
        %1703 = vmatprep.mubr.bf16.mxu0 0
        %1704 = vmatmul.mubr.bf16.gmra.mrb[0].mxu0 %v1621
        %v1705 = vpop.f32.mrb[0].mxu0
        %v1706 = vadd.f32 %v1605, %v1705
        %v1707 = vpop.f32.mrb[0].mxu0
        %v1708 = vpop.f32.mrb[0].mxu0
        %v1709 = vpop.f32.mrb[0].mxu0
        %1710 = vdwg.mxu0
        %v1711 = vmax.f32 %v1706, 0.0
        %v1712 = vpack.c.bf16 %v1711, %v1711
        %s1713 = scalar_lea.vmem %s342, 256 [#allocation8]
        %v1714 = vld [vmem:[%s1713] sm:$0xf]
        %v1715 = vld [vmem:[%s1713 + $0x4] sm:$0xf]
        %v1716 = vld [vmem:[%s1713 + $0x8] sm:$0xf]
        %v1717 = vld [vmem:[%s1713 + $0xc] sm:$0xf]
        %v1718 = vld [vmem:[%s1713 + $0x10] sm:$0xf]
        %v1719 = vld [vmem:[%s1713 + $0x14] sm:$0xf]
        %v1720 = vld [vmem:[%s1713 + $0x18] sm:$0xf]
        %v1721 = vld [vmem:[%s1713 + $0x1c] sm:$0xf]
        %v1722 = vld [vmem:[%s1713 + $0x20] sm:$0xf]
        %v1723 = vld [vmem:[%s1713 + $0x24] sm:$0xf]
        %v1724 = vld [vmem:[%s1713 + $0x28] sm:$0xf]
        %v1725 = vld [vmem:[%s1713 + $0x2c] sm:$0xf]
        %v1726 = vld [vmem:[%s1713 + $0x30] sm:$0xf]
        %v1727 = vld [vmem:[%s1713 + $0x34] sm:$0xf]
        %v1728 = vld [vmem:[%s1713 + $0x38] sm:$0xf]
        %v1729 = vld [vmem:[%s1713 + $0x3c] sm:$0xf]
        %v1746 = vunpack.c.l.b16 %v1714
        %v1747 = vunpack.c.l.b16 %v1715
        %v1748 = vunpack.c.l.b16 %v1716
        %v1749 = vunpack.c.l.b16 %v1717
        %v1750 = vunpack.c.l.b16 %v1718
        %v1751 = vunpack.c.l.b16 %v1719
        %v1752 = vunpack.c.l.b16 %v1720
        %v1753 = vunpack.c.l.b16 %v1721
        %v1754 = vunpack.c.l.b16 %v1722
        %v1755 = vunpack.c.l.b16 %v1723
        %v1756 = vunpack.c.l.b16 %v1724
        %v1757 = vunpack.c.l.b16 %v1725
        %v1758 = vunpack.c.l.b16 %v1726
        %v1759 = vunpack.c.l.b16 %v1727
        %v1760 = vunpack.c.l.b16 %v1728
        %v1761 = vunpack.c.l.b16 %v1729
        %v1762 = vpack.c.b16 %v1747, %v1746
        %v1763 = vpack.c.b16 %v1749, %v1748
        %v1764 = vpack.c.b16 %v1751, %v1750
        %v1765 = vpack.c.b16 %v1753, %v1752
        %v1766 = vpack.c.b16 %v1755, %v1754
        %v1767 = vpack.c.b16 %v1757, %v1756
        %v1768 = vpack.c.b16 %v1759, %v1758
        %v1769 = vpack.c.b16 %v1761, %v1760
        %1778 = vmatprep.subr.bf16.mxu0 0
        %1779 = vmatpush1.bf16.msra.mxu0 %v1762
        %1780 = vmatprep.subr.bf16.mxu0 0
        %1781 = vmatpush1.bf16.msra.mxu0 %v1763
        %1782 = vmatprep.subr.bf16.mxu0 0
        %1783 = vmatpush1.bf16.msra.mxu0 %v1764
        %1784 = vmatprep.subr.bf16.mxu0 0
        %1785 = vmatpush1.bf16.msra.mxu0 %v1765
        %1786 = vmatprep.subr.bf16.mxu0 0
        %1787 = vmatpush1.bf16.msra.mxu0 %v1766
        %1788 = vmatprep.subr.bf16.mxu0 0
        %1789 = vmatpush1.bf16.msra.mxu0 %v1767
        %1790 = vmatprep.subr.bf16.mxu0 0
        %1791 = vmatpush1.bf16.msra.mxu0 %v1768
        %1792 = vmatprep.subr.bf16.mxu0 0
        %1793 = vmatpush1.bf16.msra.mxu0 %v1769
        %1794 = vmatprep.subr.bf16.mxu0 0
        %1795 = vmatpush1.bf16.msra.mxu0 0
        %1796 = vmatprep.subr.bf16.mxu0 0
        %1797 = vmatpush1.bf16.msra.mxu0 0
        %1798 = vmatprep.subr.bf16.mxu0 0
        %1799 = vmatpush1.bf16.msra.mxu0 0
        %1800 = vmatprep.subr.bf16.mxu0 0
        %1801 = vmatpush1.bf16.msra.mxu0 0
        %1802 = vmatprep.subr.bf16.mxu0 0
        %1803 = vmatpush1.bf16.msra.mxu0 0
        %1804 = vmatprep.subr.bf16.mxu0 0
        %1805 = vmatpush1.bf16.msra.mxu0 0
        %1806 = vmatprep.subr.bf16.mxu0 0
        %1807 = vmatpush1.bf16.msra.mxu0 0
        %1808 = vmatprep.subr.bf16.mxu0 0
        %1809 = vmatpush1.bf16.msra.mxu0 0
        %1810 = vmatprep.mubr.bf16.mxu0 0
        %1811 = vmatmul.mubr.bf16.gmra.mrb[0].mxu0 %v1712
        %v1812 = vpop.f32.mrb[0].mxu0
        %v1813 = vadd.f32 0.0, %v1812
        %v1814 = vpop.f32.mrb[0].mxu0
        %v1815 = vpop.f32.mrb[0].mxu0
        %v1816 = vpop.f32.mrb[0].mxu0
        %1817 = vdwg.mxu0
        %v1819 = vrot.slane %v1813, 4
        %v1820 = vrot.slane %v1813, 5
        %v1821 = vrot.slane %v1813, 6
        %v1822 = vrot.slane %v1813, 7
        %v1823 = vrot.slane %v1813, 1
        %v1824 = vrot.slane %v1813, 2
        %v1825 = vrot.slane %v1813, 3
        %v1834 = vadd.f32 %v403, %v1819
        %v1835 = vadd.f32 %v404, %v1820
        %v1836 = vadd.f32 %v405, %v1821
        %v1837 = vadd.f32 %v406, %v1822
        %v1838 = vadd.f32 %v407, %v1813
        %v1839 = vadd.f32 %v408, %v1823
        %v1840 = vadd.f32 %v409, %v1824
        %v1841 = vadd.f32 %v410, %v1825
        %s1842 = scalar_lea.vmem %s351, 4 [#allocation10]
        %v1843 = vld [vmem:[%s1842] sm:$0x1]
        %v1845 = vlaneseq
        %v1846 = vshrl.u32 %v1845, 7
        %v1847 = vsub.s32 0, %v1846
        %v1848 = vrot.slane %v1843, %v1847
        %v1850 = vadd.f32 %v1834, %v1848
        %v1851 = vadd.f32 %v1835, %v1848
        %v1852 = vadd.f32 %v1836, %v1848
        %v1853 = vadd.f32 %v1837, %v1848
        %v1854 = vadd.f32 %v1838, %v1848
        %v1855 = vadd.f32 %v1839, %v1848
        %v1856 = vadd.f32 %v1840, %v1848
        %v1857 = vadd.f32 %v1841, %v1848
        %1858 = vst [vmem:[%s397] sm:$0x10] %v1850
        %1859 = vst [vmem:[%s397 + $0x8] sm:$0x10] %v1851
        %1860 = vst [vmem:[%s397 + $0x10] sm:$0x10] %v1852
        %1861 = vst [vmem:[%s397 + $0x18] sm:$0x10] %v1853
        %1862 = vst [vmem:[%s397 + $0x20] sm:$0x10] %v1854
        %1863 = vst [vmem:[%s397 + $0x28] sm:$0x10] %v1855
        %1864 = vst [vmem:[%s397 + $0x30] sm:$0x10] %v1856
        %1865 = vst [vmem:[%s397 + $0x38] sm:$0x10] %v1857
        %s1866 = scalar_lea.vmem %s324, 320 [#allocation5]
        %v1867 = vld [vmem:[%s1866] sm:$0xf]
        %v1868 = vld [vmem:[%s1866 + $0x4] sm:$0xf]
        %v1869 = vld [vmem:[%s1866 + $0x8] sm:$0xf]
        %v1870 = vld [vmem:[%s1866 + $0xc] sm:$0xf]
        %v1871 = vld [vmem:[%s1866 + $0x10] sm:$0xf]
        %v1872 = vld [vmem:[%s1866 + $0x14] sm:$0xf]
        %v1873 = vld [vmem:[%s1866 + $0x18] sm:$0xf]
        %v1874 = vld [vmem:[%s1866 + $0x1c] sm:$0xf]
        %v1875 = vld [vmem:[%s1866 + $0x20] sm:$0xf]
        %v1876 = vld [vmem:[%s1866 + $0x24] sm:$0xf]
        %v1877 = vld [vmem:[%s1866 + $0x28] sm:$0xf]
        %v1878 = vld [vmem:[%s1866 + $0x2c] sm:$0xf]
        %v1879 = vld [vmem:[%s1866 + $0x30] sm:$0xf]
        %v1880 = vld [vmem:[%s1866 + $0x34] sm:$0xf]
        %v1881 = vld [vmem:[%s1866 + $0x38] sm:$0xf]
        %v1882 = vld [vmem:[%s1866 + $0x3c] sm:$0xf]
        %s1883 = scalar_lea.vmem %s333, 5 [#allocation7]
        %v1884 = vld [vmem:[%s1883] sm:$0x1]
        %v1886 = vlaneseq
        %v1887 = vshrl.u32 %v1886, 7
        %v1888 = vsub.s32 0, %v1887
        %v1889 = vrot.slane %v1884, %v1888
        %v1891 = vrot.slane %v458, 5
        %v1892 = vrot.slane %v459, 4
        %v1893 = vsel %vm467, %v1892, %v1891
        %v1894 = vrot.slane %v460, 3
        %v1895 = vsel %vm470, %v1894, %v1893
        %v1896 = vrot.slane %v461, 2
        %v1897 = vsel %vm473, %v1896, %v1895
        %v1898 = vrot.slane %v462, 1
        %v1899 = vsel %vm476, %v1898, %v1897
        %v1900 = vsel %vm479, %v463, %v1899
        %v1901 = vrot.slane %v464, 7
        %v1902 = vsel %vm482, %v1901, %v1900
        %v1903 = vrot.slane %v465, 6
        %v1904 = vsel %vm485, %v1903, %v1902
        %v1905 = vpack.c.b16 %v1904, %v1904
        %v1923 = vunpack.c.l.b16 %v1867
        %v1924 = vunpack.c.l.b16 %v1868
        %v1925 = vunpack.c.l.b16 %v1869
        %v1926 = vunpack.c.l.b16 %v1870
        %v1927 = vunpack.c.l.b16 %v1871
        %v1928 = vunpack.c.l.b16 %v1872
        %v1929 = vunpack.c.l.b16 %v1873
        %v1930 = vunpack.c.l.b16 %v1874
        %v1931 = vunpack.c.l.b16 %v1875
        %v1932 = vunpack.c.l.b16 %v1876
        %v1933 = vunpack.c.l.b16 %v1877
        %v1934 = vunpack.c.l.b16 %v1878
        %v1935 = vunpack.c.l.b16 %v1879
        %v1936 = vunpack.c.l.b16 %v1880
        %v1937 = vunpack.c.l.b16 %v1881
        %v1938 = vunpack.c.l.b16 %v1882
        %v1939 = vpack.c.b16 %v1924, %v1923
        %v1940 = vpack.c.b16 %v1926, %v1925
        %v1941 = vpack.c.b16 %v1928, %v1927
        %v1942 = vpack.c.b16 %v1930, %v1929
        %v1943 = vpack.c.b16 %v1932, %v1931
        %v1944 = vpack.c.b16 %v1934, %v1933
        %v1945 = vpack.c.b16 %v1936, %v1935
        %v1946 = vpack.c.b16 %v1938, %v1937
        %1955 = vmatprep.subr.bf16.mxu0 0
        %1956 = vmatpush1.bf16.msra.mxu0 %v1939
        %1957 = vmatprep.subr.bf16.mxu0 0
        %1958 = vmatpush1.bf16.msra.mxu0 %v1940
        %1959 = vmatprep.subr.bf16.mxu0 0
        %1960 = vmatpush1.bf16.msra.mxu0 %v1941
        %1961 = vmatprep.subr.bf16.mxu0 0
        %1962 = vmatpush1.bf16.msra.mxu0 %v1942
        %1963 = vmatprep.subr.bf16.mxu0 0
        %1964 = vmatpush1.bf16.msra.mxu0 %v1943
        %1965 = vmatprep.subr.bf16.mxu0 0
        %1966 = vmatpush1.bf16.msra.mxu0 %v1944
        %1967 = vmatprep.subr.bf16.mxu0 0
        %1968 = vmatpush1.bf16.msra.mxu0 %v1945
        %1969 = vmatprep.subr.bf16.mxu0 0
        %1970 = vmatpush1.bf16.msra.mxu0 %v1946
        %1971 = vmatprep.subr.bf16.mxu0 0
        %1972 = vmatpush1.bf16.msra.mxu0 0
        %1973 = vmatprep.subr.bf16.mxu0 0
        %1974 = vmatpush1.bf16.msra.mxu0 0
        %1975 = vmatprep.subr.bf16.mxu0 0
        %1976 = vmatpush1.bf16.msra.mxu0 0
        %1977 = vmatprep.subr.bf16.mxu0 0
        %1978 = vmatpush1.bf16.msra.mxu0 0
        %1979 = vmatprep.subr.bf16.mxu0 0
        %1980 = vmatpush1.bf16.msra.mxu0 0
        %1981 = vmatprep.subr.bf16.mxu0 0
        %1982 = vmatpush1.bf16.msra.mxu0 0
        %1983 = vmatprep.subr.bf16.mxu0 0
        %1984 = vmatpush1.bf16.msra.mxu0 0
        %1985 = vmatprep.subr.bf16.mxu0 0
        %1986 = vmatpush1.bf16.msra.mxu0 0
        %1987 = vmatprep.mubr.bf16.mxu0 0
        %1988 = vmatmul.mubr.bf16.gmra.mrb[0].mxu0 %v1905
        %v1989 = vpop.f32.mrb[0].mxu0
        %v1990 = vadd.f32 %v1889, %v1989
        %v1991 = vpop.f32.mrb[0].mxu0
        %v1992 = vpop.f32.mrb[0].mxu0
        %v1993 = vpop.f32.mrb[0].mxu0
        %1994 = vdwg.mxu0
        %v1995 = vmax.f32 %v1990, 0.0
        %v1996 = vpack.c.bf16 %v1995, %v1995
        %s1997 = scalar_lea.vmem %s342, 320 [#allocation8]
        %v1998 = vld [vmem:[%s1997] sm:$0xf]
        %v1999 = vld [vmem:[%s1997 + $0x4] sm:$0xf]
        %v2000 = vld [vmem:[%s1997 + $0x8] sm:$0xf]
        %v2001 = vld [vmem:[%s1997 + $0xc] sm:$0xf]
        %v2002 = vld [vmem:[%s1997 + $0x10] sm:$0xf]
        %v2003 = vld [vmem:[%s1997 + $0x14] sm:$0xf]
        %v2004 = vld [vmem:[%s1997 + $0x18] sm:$0xf]
        %v2005 = vld [vmem:[%s1997 + $0x1c] sm:$0xf]
        %v2006 = vld [vmem:[%s1997 + $0x20] sm:$0xf]
        %v2007 = vld [vmem:[%s1997 + $0x24] sm:$0xf]
        %v2008 = vld [vmem:[%s1997 + $0x28] sm:$0xf]
        %v2009 = vld [vmem:[%s1997 + $0x2c] sm:$0xf]
        %v2010 = vld [vmem:[%s1997 + $0x30] sm:$0xf]
        %v2011 = vld [vmem:[%s1997 + $0x34] sm:$0xf]
        %v2012 = vld [vmem:[%s1997 + $0x38] sm:$0xf]
        %v2013 = vld [vmem:[%s1997 + $0x3c] sm:$0xf]
        %v2030 = vunpack.c.l.b16 %v1998
        %v2031 = vunpack.c.l.b16 %v1999
        %v2032 = vunpack.c.l.b16 %v2000
        %v2033 = vunpack.c.l.b16 %v2001
        %v2034 = vunpack.c.l.b16 %v2002
        %v2035 = vunpack.c.l.b16 %v2003
        %v2036 = vunpack.c.l.b16 %v2004
        %v2037 = vunpack.c.l.b16 %v2005
        %v2038 = vunpack.c.l.b16 %v2006
        %v2039 = vunpack.c.l.b16 %v2007
        %v2040 = vunpack.c.l.b16 %v2008
        %v2041 = vunpack.c.l.b16 %v2009
        %v2042 = vunpack.c.l.b16 %v2010
        %v2043 = vunpack.c.l.b16 %v2011
        %v2044 = vunpack.c.l.b16 %v2012
        %v2045 = vunpack.c.l.b16 %v2013
        %v2046 = vpack.c.b16 %v2031, %v2030
        %v2047 = vpack.c.b16 %v2033, %v2032
        %v2048 = vpack.c.b16 %v2035, %v2034
        %v2049 = vpack.c.b16 %v2037, %v2036
        %v2050 = vpack.c.b16 %v2039, %v2038
        %v2051 = vpack.c.b16 %v2041, %v2040
        %v2052 = vpack.c.b16 %v2043, %v2042
        %v2053 = vpack.c.b16 %v2045, %v2044
        %2062 = vmatprep.subr.bf16.mxu0 0
        %2063 = vmatpush1.bf16.msra.mxu0 %v2046
        %2064 = vmatprep.subr.bf16.mxu0 0
        %2065 = vmatpush1.bf16.msra.mxu0 %v2047
        %2066 = vmatprep.subr.bf16.mxu0 0
        %2067 = vmatpush1.bf16.msra.mxu0 %v2048
        %2068 = vmatprep.subr.bf16.mxu0 0
        %2069 = vmatpush1.bf16.msra.mxu0 %v2049
        %2070 = vmatprep.subr.bf16.mxu0 0
        %2071 = vmatpush1.bf16.msra.mxu0 %v2050
        %2072 = vmatprep.subr.bf16.mxu0 0
        %2073 = vmatpush1.bf16.msra.mxu0 %v2051
        %2074 = vmatprep.subr.bf16.mxu0 0
        %2075 = vmatpush1.bf16.msra.mxu0 %v2052
        %2076 = vmatprep.subr.bf16.mxu0 0
        %2077 = vmatpush1.bf16.msra.mxu0 %v2053
        %2078 = vmatprep.subr.bf16.mxu0 0
        %2079 = vmatpush1.bf16.msra.mxu0 0
        %2080 = vmatprep.subr.bf16.mxu0 0
        %2081 = vmatpush1.bf16.msra.mxu0 0
        %2082 = vmatprep.subr.bf16.mxu0 0
        %2083 = vmatpush1.bf16.msra.mxu0 0
        %2084 = vmatprep.subr.bf16.mxu0 0
        %2085 = vmatpush1.bf16.msra.mxu0 0
        %2086 = vmatprep.subr.bf16.mxu0 0
        %2087 = vmatpush1.bf16.msra.mxu0 0
        %2088 = vmatprep.subr.bf16.mxu0 0
        %2089 = vmatpush1.bf16.msra.mxu0 0
        %2090 = vmatprep.subr.bf16.mxu0 0
        %2091 = vmatpush1.bf16.msra.mxu0 0
        %2092 = vmatprep.subr.bf16.mxu0 0
        %2093 = vmatpush1.bf16.msra.mxu0 0
        %2094 = vmatprep.mubr.bf16.mxu0 0
        %2095 = vmatmul.mubr.bf16.gmra.mrb[0].mxu0 %v1996
        %v2096 = vpop.f32.mrb[0].mxu0
        %v2097 = vadd.f32 0.0, %v2096
        %v2098 = vpop.f32.mrb[0].mxu0
        %v2099 = vpop.f32.mrb[0].mxu0
        %v2100 = vpop.f32.mrb[0].mxu0
        %2101 = vdwg.mxu0
        %v2103 = vrot.slane %v2097, 3
        %v2104 = vrot.slane %v2097, 4
        %v2105 = vrot.slane %v2097, 5
        %v2106 = vrot.slane %v2097, 6
        %v2107 = vrot.slane %v2097, 7
        %v2108 = vrot.slane %v2097, 1
        %v2109 = vrot.slane %v2097, 2
        %v2118 = vadd.f32 %v403, %v2103
        %v2119 = vadd.f32 %v404, %v2104
        %v2120 = vadd.f32 %v405, %v2105
        %v2121 = vadd.f32 %v406, %v2106
        %v2122 = vadd.f32 %v407, %v2107
        %v2123 = vadd.f32 %v408, %v2097
        %v2124 = vadd.f32 %v409, %v2108
        %v2125 = vadd.f32 %v410, %v2109
        %s2126 = scalar_lea.vmem %s351, 5 [#allocation10]
        %v2127 = vld [vmem:[%s2126] sm:$0x1]
        %v2129 = vlaneseq
        %v2130 = vshrl.u32 %v2129, 7
        %v2131 = vsub.s32 0, %v2130
        %v2132 = vrot.slane %v2127, %v2131
        %v2134 = vadd.f32 %v2118, %v2132
        %v2135 = vadd.f32 %v2119, %v2132
        %v2136 = vadd.f32 %v2120, %v2132
        %v2137 = vadd.f32 %v2121, %v2132
        %v2138 = vadd.f32 %v2122, %v2132
        %v2139 = vadd.f32 %v2123, %v2132
        %v2140 = vadd.f32 %v2124, %v2132
        %v2141 = vadd.f32 %v2125, %v2132
        %2142 = vst [vmem:[%s397] sm:$0x20] %v2134
        %2143 = vst [vmem:[%s397 + $0x8] sm:$0x20] %v2135
        %2144 = vst [vmem:[%s397 + $0x10] sm:$0x20] %v2136
        %2145 = vst [vmem:[%s397 + $0x18] sm:$0x20] %v2137
        %2146 = vst [vmem:[%s397 + $0x20] sm:$0x20] %v2138
        %2147 = vst [vmem:[%s397 + $0x28] sm:$0x20] %v2139
        %2148 = vst [vmem:[%s397 + $0x30] sm:$0x20] %v2140
        %2149 = vst [vmem:[%s397 + $0x38] sm:$0x20] %v2141
        %s2150 = scalar_lea.vmem %s324, 384 [#allocation5]
        %v2151 = vld [vmem:[%s2150] sm:$0xf]
        %v2152 = vld [vmem:[%s2150 + $0x4] sm:$0xf]
        %v2153 = vld [vmem:[%s2150 + $0x8] sm:$0xf]
        %v2154 = vld [vmem:[%s2150 + $0xc] sm:$0xf]
        %v2155 = vld [vmem:[%s2150 + $0x10] sm:$0xf]
        %v2156 = vld [vmem:[%s2150 + $0x14] sm:$0xf]
        %v2157 = vld [vmem:[%s2150 + $0x18] sm:$0xf]
        %v2158 = vld [vmem:[%s2150 + $0x1c] sm:$0xf]
        %v2159 = vld [vmem:[%s2150 + $0x20] sm:$0xf]
        %v2160 = vld [vmem:[%s2150 + $0x24] sm:$0xf]
        %v2161 = vld [vmem:[%s2150 + $0x28] sm:$0xf]
        %v2162 = vld [vmem:[%s2150 + $0x2c] sm:$0xf]
        %v2163 = vld [vmem:[%s2150 + $0x30] sm:$0xf]
        %v2164 = vld [vmem:[%s2150 + $0x34] sm:$0xf]
        %v2165 = vld [vmem:[%s2150 + $0x38] sm:$0xf]
        %v2166 = vld [vmem:[%s2150 + $0x3c] sm:$0xf]
        %s2167 = scalar_lea.vmem %s333, 6 [#allocation7]
        %v2168 = vld [vmem:[%s2167] sm:$0x1]
        %v2170 = vlaneseq
        %v2171 = vshrl.u32 %v2170, 7
        %v2172 = vsub.s32 0, %v2171
        %v2173 = vrot.slane %v2168, %v2172
        %v2175 = vrot.slane %v458, 6
        %v2176 = vrot.slane %v459, 5
        %v2177 = vsel %vm467, %v2176, %v2175
        %v2178 = vrot.slane %v460, 4
        %v2179 = vsel %vm470, %v2178, %v2177
        %v2180 = vrot.slane %v461, 3
        %v2181 = vsel %vm473, %v2180, %v2179
        %v2182 = vrot.slane %v462, 2
        %v2183 = vsel %vm476, %v2182, %v2181
        %v2184 = vrot.slane %v463, 1
        %v2185 = vsel %vm479, %v2184, %v2183
        %v2186 = vsel %vm482, %v464, %v2185
        %v2187 = vrot.slane %v465, 7
        %v2188 = vsel %vm485, %v2187, %v2186
        %v2189 = vpack.c.b16 %v2188, %v2188
        %v2207 = vunpack.c.l.b16 %v2151
        %v2208 = vunpack.c.l.b16 %v2152
        %v2209 = vunpack.c.l.b16 %v2153
        %v2210 = vunpack.c.l.b16 %v2154
        %v2211 = vunpack.c.l.b16 %v2155
        %v2212 = vunpack.c.l.b16 %v2156
        %v2213 = vunpack.c.l.b16 %v2157
        %v2214 = vunpack.c.l.b16 %v2158
        %v2215 = vunpack.c.l.b16 %v2159
        %v2216 = vunpack.c.l.b16 %v2160
        %v2217 = vunpack.c.l.b16 %v2161
        %v2218 = vunpack.c.l.b16 %v2162
        %v2219 = vunpack.c.l.b16 %v2163
        %v2220 = vunpack.c.l.b16 %v2164
        %v2221 = vunpack.c.l.b16 %v2165
        %v2222 = vunpack.c.l.b16 %v2166
        %v2223 = vpack.c.b16 %v2208, %v2207
        %v2224 = vpack.c.b16 %v2210, %v2209
        %v2225 = vpack.c.b16 %v2212, %v2211
        %v2226 = vpack.c.b16 %v2214, %v2213
        %v2227 = vpack.c.b16 %v2216, %v2215
        %v2228 = vpack.c.b16 %v2218, %v2217
        %v2229 = vpack.c.b16 %v2220, %v2219
        %v2230 = vpack.c.b16 %v2222, %v2221
        %2239 = vmatprep.subr.bf16.mxu0 0
        %2240 = vmatpush1.bf16.msra.mxu0 %v2223
        %2241 = vmatprep.subr.bf16.mxu0 0
        %2242 = vmatpush1.bf16.msra.mxu0 %v2224
        %2243 = vmatprep.subr.bf16.mxu0 0
        %2244 = vmatpush1.bf16.msra.mxu0 %v2225
        %2245 = vmatprep.subr.bf16.mxu0 0
        %2246 = vmatpush1.bf16.msra.mxu0 %v2226
        %2247 = vmatprep.subr.bf16.mxu0 0
        %2248 = vmatpush1.bf16.msra.mxu0 %v2227
        %2249 = vmatprep.subr.bf16.mxu0 0
        %2250 = vmatpush1.bf16.msra.mxu0 %v2228
        %2251 = vmatprep.subr.bf16.mxu0 0
        %2252 = vmatpush1.bf16.msra.mxu0 %v2229
        %2253 = vmatprep.subr.bf16.mxu0 0
        %2254 = vmatpush1.bf16.msra.mxu0 %v2230
        %2255 = vmatprep.subr.bf16.mxu0 0
        %2256 = vmatpush1.bf16.msra.mxu0 0
        %2257 = vmatprep.subr.bf16.mxu0 0
        %2258 = vmatpush1.bf16.msra.mxu0 0
        %2259 = vmatprep.subr.bf16.mxu0 0
        %2260 = vmatpush1.bf16.msra.mxu0 0
        %2261 = vmatprep.subr.bf16.mxu0 0
        %2262 = vmatpush1.bf16.msra.mxu0 0
        %2263 = vmatprep.subr.bf16.mxu0 0
        %2264 = vmatpush1.bf16.msra.mxu0 0
        %2265 = vmatprep.subr.bf16.mxu0 0
        %2266 = vmatpush1.bf16.msra.mxu0 0
        %2267 = vmatprep.subr.bf16.mxu0 0
        %2268 = vmatpush1.bf16.msra.mxu0 0
        %2269 = vmatprep.subr.bf16.mxu0 0
        %2270 = vmatpush1.bf16.msra.mxu0 0
        %2271 = vmatprep.mubr.bf16.mxu0 0
        %2272 = vmatmul.mubr.bf16.gmra.mrb[0].mxu0 %v2189
        %v2273 = vpop.f32.mrb[0].mxu0
        %v2274 = vadd.f32 %v2173, %v2273
        %v2275 = vpop.f32.mrb[0].mxu0
        %v2276 = vpop.f32.mrb[0].mxu0
        %v2277 = vpop.f32.mrb[0].mxu0
        %2278 = vdwg.mxu0
        %v2279 = vmax.f32 %v2274, 0.0
        %v2280 = vpack.c.bf16 %v2279, %v2279
        %s2281 = scalar_lea.vmem %s342, 384 [#allocation8]
        %v2282 = vld [vmem:[%s2281] sm:$0xf]
        %v2283 = vld [vmem:[%s2281 + $0x4] sm:$0xf]
        %v2284 = vld [vmem:[%s2281 + $0x8] sm:$0xf]
        %v2285 = vld [vmem:[%s2281 + $0xc] sm:$0xf]
        %v2286 = vld [vmem:[%s2281 + $0x10] sm:$0xf]
        %v2287 = vld [vmem:[%s2281 + $0x14] sm:$0xf]
        %v2288 = vld [vmem:[%s2281 + $0x18] sm:$0xf]
        %v2289 = vld [vmem:[%s2281 + $0x1c] sm:$0xf]
        %v2290 = vld [vmem:[%s2281 + $0x20] sm:$0xf]
        %v2291 = vld [vmem:[%s2281 + $0x24] sm:$0xf]
        %v2292 = vld [vmem:[%s2281 + $0x28] sm:$0xf]
        %v2293 = vld [vmem:[%s2281 + $0x2c] sm:$0xf]
        %v2294 = vld [vmem:[%s2281 + $0x30] sm:$0xf]
        %v2295 = vld [vmem:[%s2281 + $0x34] sm:$0xf]
        %v2296 = vld [vmem:[%s2281 + $0x38] sm:$0xf]
        %v2297 = vld [vmem:[%s2281 + $0x3c] sm:$0xf]
        %v2314 = vunpack.c.l.b16 %v2282
        %v2315 = vunpack.c.l.b16 %v2283
        %v2316 = vunpack.c.l.b16 %v2284
        %v2317 = vunpack.c.l.b16 %v2285
        %v2318 = vunpack.c.l.b16 %v2286
        %v2319 = vunpack.c.l.b16 %v2287
        %v2320 = vunpack.c.l.b16 %v2288
        %v2321 = vunpack.c.l.b16 %v2289
        %v2322 = vunpack.c.l.b16 %v2290
        %v2323 = vunpack.c.l.b16 %v2291
        %v2324 = vunpack.c.l.b16 %v2292
        %v2325 = vunpack.c.l.b16 %v2293
        %v2326 = vunpack.c.l.b16 %v2294
        %v2327 = vunpack.c.l.b16 %v2295
        %v2328 = vunpack.c.l.b16 %v2296
        %v2329 = vunpack.c.l.b16 %v2297
        %v2330 = vpack.c.b16 %v2315, %v2314
        %v2331 = vpack.c.b16 %v2317, %v2316
        %v2332 = vpack.c.b16 %v2319, %v2318
        %v2333 = vpack.c.b16 %v2321, %v2320
        %v2334 = vpack.c.b16 %v2323, %v2322
        %v2335 = vpack.c.b16 %v2325, %v2324
        %v2336 = vpack.c.b16 %v2327, %v2326
        %v2337 = vpack.c.b16 %v2329, %v2328
        %2346 = vmatprep.subr.bf16.mxu0 0
        %2347 = vmatpush1.bf16.msra.mxu0 %v2330
        %2348 = vmatprep.subr.bf16.mxu0 0
        %2349 = vmatpush1.bf16.msra.mxu0 %v2331
        %2350 = vmatprep.subr.bf16.mxu0 0
        %2351 = vmatpush1.bf16.msra.mxu0 %v2332
        %2352 = vmatprep.subr.bf16.mxu0 0
        %2353 = vmatpush1.bf16.msra.mxu0 %v2333
        %2354 = vmatprep.subr.bf16.mxu0 0
        %2355 = vmatpush1.bf16.msra.mxu0 %v2334
        %2356 = vmatprep.subr.bf16.mxu0 0
        %2357 = vmatpush1.bf16.msra.mxu0 %v2335
        %2358 = vmatprep.subr.bf16.mxu0 0
        %2359 = vmatpush1.bf16.msra.mxu0 %v2336
        %2360 = vmatprep.subr.bf16.mxu0 0
        %2361 = vmatpush1.bf16.msra.mxu0 %v2337
        %2362 = vmatprep.subr.bf16.mxu0 0
        %2363 = vmatpush1.bf16.msra.mxu0 0
        %2364 = vmatprep.subr.bf16.mxu0 0
        %2365 = vmatpush1.bf16.msra.mxu0 0
        %2366 = vmatprep.subr.bf16.mxu0 0
        %2367 = vmatpush1.bf16.msra.mxu0 0
        %2368 = vmatprep.subr.bf16.mxu0 0
        %2369 = vmatpush1.bf16.msra.mxu0 0
        %2370 = vmatprep.subr.bf16.mxu0 0
        %2371 = vmatpush1.bf16.msra.mxu0 0
        %2372 = vmatprep.subr.bf16.mxu0 0
        %2373 = vmatpush1.bf16.msra.mxu0 0
        %2374 = vmatprep.subr.bf16.mxu0 0
        %2375 = vmatpush1.bf16.msra.mxu0 0
        %2376 = vmatprep.subr.bf16.mxu0 0
        %2377 = vmatpush1.bf16.msra.mxu0 0
        %2378 = vmatprep.mubr.bf16.mxu0 0
        %2379 = vmatmul.mubr.bf16.gmra.mrb[0].mxu0 %v2280
        %v2380 = vpop.f32.mrb[0].mxu0
        %v2381 = vadd.f32 0.0, %v2380
        %v2382 = vpop.f32.mrb[0].mxu0
        %v2383 = vpop.f32.mrb[0].mxu0
        %v2384 = vpop.f32.mrb[0].mxu0
        %2385 = vdwg.mxu0
        %v2387 = vrot.slane %v2381, 2
        %v2388 = vrot.slane %v2381, 3
        %v2389 = vrot.slane %v2381, 4
        %v2390 = vrot.slane %v2381, 5
        %v2391 = vrot.slane %v2381, 6
        %v2392 = vrot.slane %v2381, 7
        %v2393 = vrot.slane %v2381, 1
        %v2402 = vadd.f32 %v403, %v2387
        %v2403 = vadd.f32 %v404, %v2388
        %v2404 = vadd.f32 %v405, %v2389
        %v2405 = vadd.f32 %v406, %v2390
        %v2406 = vadd.f32 %v407, %v2391
        %v2407 = vadd.f32 %v408, %v2392
        %v2408 = vadd.f32 %v409, %v2381
        %v2409 = vadd.f32 %v410, %v2393
        %s2410 = scalar_lea.vmem %s351, 6 [#allocation10]
        %v2411 = vld [vmem:[%s2410] sm:$0x1]
        %v2413 = vlaneseq
        %v2414 = vshrl.u32 %v2413, 7
        %v2415 = vsub.s32 0, %v2414
        %v2416 = vrot.slane %v2411, %v2415
        %v2418 = vadd.f32 %v2402, %v2416
        %v2419 = vadd.f32 %v2403, %v2416
        %v2420 = vadd.f32 %v2404, %v2416
        %v2421 = vadd.f32 %v2405, %v2416
        %v2422 = vadd.f32 %v2406, %v2416
        %v2423 = vadd.f32 %v2407, %v2416
        %v2424 = vadd.f32 %v2408, %v2416
        %v2425 = vadd.f32 %v2409, %v2416
        %2426 = vst [vmem:[%s397] sm:$0x40] %v2418
        %2427 = vst [vmem:[%s397 + $0x8] sm:$0x40] %v2419
        %2428 = vst [vmem:[%s397 + $0x10] sm:$0x40] %v2420
        %2429 = vst [vmem:[%s397 + $0x18] sm:$0x40] %v2421
        %2430 = vst [vmem:[%s397 + $0x20] sm:$0x40] %v2422
        %2431 = vst [vmem:[%s397 + $0x28] sm:$0x40] %v2423
        %2432 = vst [vmem:[%s397 + $0x30] sm:$0x40] %v2424
        %2433 = vst [vmem:[%s397 + $0x38] sm:$0x40] %v2425
        %s2434 = scalar_lea.vmem %s324, 448 [#allocation5]
        %v2435 = vld [vmem:[%s2434] sm:$0xf]
        %v2436 = vld [vmem:[%s2434 + $0x4] sm:$0xf]
        %v2437 = vld [vmem:[%s2434 + $0x8] sm:$0xf]
        %v2438 = vld [vmem:[%s2434 + $0xc] sm:$0xf]
        %v2439 = vld [vmem:[%s2434 + $0x10] sm:$0xf]
        %v2440 = vld [vmem:[%s2434 + $0x14] sm:$0xf]
        %v2441 = vld [vmem:[%s2434 + $0x18] sm:$0xf]
        %v2442 = vld [vmem:[%s2434 + $0x1c] sm:$0xf]
        %v2443 = vld [vmem:[%s2434 + $0x20] sm:$0xf]
        %v2444 = vld [vmem:[%s2434 + $0x24] sm:$0xf]
        %v2445 = vld [vmem:[%s2434 + $0x28] sm:$0xf]
        %v2446 = vld [vmem:[%s2434 + $0x2c] sm:$0xf]
        %v2447 = vld [vmem:[%s2434 + $0x30] sm:$0xf]
        %v2448 = vld [vmem:[%s2434 + $0x34] sm:$0xf]
        %v2449 = vld [vmem:[%s2434 + $0x38] sm:$0xf]
        %v2450 = vld [vmem:[%s2434 + $0x3c] sm:$0xf]
        %s2451 = scalar_lea.vmem %s333, 7 [#allocation7]
        %v2452 = vld [vmem:[%s2451] sm:$0x1]
        %v2454 = vlaneseq
        %v2455 = vshrl.u32 %v2454, 7
        %v2456 = vsub.s32 0, %v2455
        %v2457 = vrot.slane %v2452, %v2456
        %v2459 = vrot.slane %v458, 7
        %v2460 = vrot.slane %v459, 6
        %v2461 = vsel %vm467, %v2460, %v2459
        %v2462 = vrot.slane %v460, 5
        %v2463 = vsel %vm470, %v2462, %v2461
        %v2464 = vrot.slane %v461, 4
        %v2465 = vsel %vm473, %v2464, %v2463
        %v2466 = vrot.slane %v462, 3
        %v2467 = vsel %vm476, %v2466, %v2465
        %v2468 = vrot.slane %v463, 2
        %v2469 = vsel %vm479, %v2468, %v2467
        %v2470 = vrot.slane %v464, 1
        %v2471 = vsel %vm482, %v2470, %v2469
        %v2472 = vsel %vm485, %v465, %v2471
        %v2473 = vpack.c.b16 %v2472, %v2472
        %v2491 = vunpack.c.l.b16 %v2435
        %v2492 = vunpack.c.l.b16 %v2436
        %v2493 = vunpack.c.l.b16 %v2437
        %v2494 = vunpack.c.l.b16 %v2438
        %v2495 = vunpack.c.l.b16 %v2439
        %v2496 = vunpack.c.l.b16 %v2440
        %v2497 = vunpack.c.l.b16 %v2441
        %v2498 = vunpack.c.l.b16 %v2442
        %v2499 = vunpack.c.l.b16 %v2443
        %v2500 = vunpack.c.l.b16 %v2444
        %v2501 = vunpack.c.l.b16 %v2445
        %v2502 = vunpack.c.l.b16 %v2446
        %v2503 = vunpack.c.l.b16 %v2447
        %v2504 = vunpack.c.l.b16 %v2448
        %v2505 = vunpack.c.l.b16 %v2449
        %v2506 = vunpack.c.l.b16 %v2450
        %v2507 = vpack.c.b16 %v2492, %v2491
        %v2508 = vpack.c.b16 %v2494, %v2493
        %v2509 = vpack.c.b16 %v2496, %v2495
        %v2510 = vpack.c.b16 %v2498, %v2497
        %v2511 = vpack.c.b16 %v2500, %v2499
        %v2512 = vpack.c.b16 %v2502, %v2501
        %v2513 = vpack.c.b16 %v2504, %v2503
        %v2514 = vpack.c.b16 %v2506, %v2505
        %2523 = vmatprep.subr.bf16.mxu0 0
        %2524 = vmatpush1.bf16.msra.mxu0 %v2507
        %2525 = vmatprep.subr.bf16.mxu0 0
        %2526 = vmatpush1.bf16.msra.mxu0 %v2508
        %2527 = vmatprep.subr.bf16.mxu0 0
        %2528 = vmatpush1.bf16.msra.mxu0 %v2509
        %2529 = vmatprep.subr.bf16.mxu0 0
        %2530 = vmatpush1.bf16.msra.mxu0 %v2510
        %2531 = vmatprep.subr.bf16.mxu0 0
        %2532 = vmatpush1.bf16.msra.mxu0 %v2511
        %2533 = vmatprep.subr.bf16.mxu0 0
        %2534 = vmatpush1.bf16.msra.mxu0 %v2512
        %2535 = vmatprep.subr.bf16.mxu0 0
        %2536 = vmatpush1.bf16.msra.mxu0 %v2513
        %2537 = vmatprep.subr.bf16.mxu0 0
        %2538 = vmatpush1.bf16.msra.mxu0 %v2514
        %2539 = vmatprep.subr.bf16.mxu0 0
        %2540 = vmatpush1.bf16.msra.mxu0 0
        %2541 = vmatprep.subr.bf16.mxu0 0
        %2542 = vmatpush1.bf16.msra.mxu0 0
        %2543 = vmatprep.subr.bf16.mxu0 0
        %2544 = vmatpush1.bf16.msra.mxu0 0
        %2545 = vmatprep.subr.bf16.mxu0 0
        %2546 = vmatpush1.bf16.msra.mxu0 0
        %2547 = vmatprep.subr.bf16.mxu0 0
        %2548 = vmatpush1.bf16.msra.mxu0 0
        %2549 = vmatprep.subr.bf16.mxu0 0
        %2550 = vmatpush1.bf16.msra.mxu0 0
        %2551 = vmatprep.subr.bf16.mxu0 0
        %2552 = vmatpush1.bf16.msra.mxu0 0
        %2553 = vmatprep.subr.bf16.mxu0 0
        %2554 = vmatpush1.bf16.msra.mxu0 0
        %2555 = vmatprep.mubr.bf16.mxu0 0
        %2556 = vmatmul.mubr.bf16.gmra.mrb[0].mxu0 %v2473
        %v2557 = vpop.f32.mrb[0].mxu0
        %v2558 = vadd.f32 %v2457, %v2557
        %v2559 = vpop.f32.mrb[0].mxu0
        %v2560 = vpop.f32.mrb[0].mxu0
        %v2561 = vpop.f32.mrb[0].mxu0
        %2562 = vdwg.mxu0
        %v2563 = vmax.f32 %v2558, 0.0
        %v2564 = vpack.c.bf16 %v2563, %v2563
        %s2565 = scalar_lea.vmem %s342, 448 [#allocation8]
        %v2566 = vld [vmem:[%s2565] sm:$0xf]
        %v2567 = vld [vmem:[%s2565 + $0x4] sm:$0xf]
        %v2568 = vld [vmem:[%s2565 + $0x8] sm:$0xf]
        %v2569 = vld [vmem:[%s2565 + $0xc] sm:$0xf]
        %v2570 = vld [vmem:[%s2565 + $0x10] sm:$0xf]
        %v2571 = vld [vmem:[%s2565 + $0x14] sm:$0xf]
        %v2572 = vld [vmem:[%s2565 + $0x18] sm:$0xf]
        %v2573 = vld [vmem:[%s2565 + $0x1c] sm:$0xf]
        %v2574 = vld [vmem:[%s2565 + $0x20] sm:$0xf]
        %v2575 = vld [vmem:[%s2565 + $0x24] sm:$0xf]
        %v2576 = vld [vmem:[%s2565 + $0x28] sm:$0xf]
        %v2577 = vld [vmem:[%s2565 + $0x2c] sm:$0xf]
        %v2578 = vld [vmem:[%s2565 + $0x30] sm:$0xf]
        %v2579 = vld [vmem:[%s2565 + $0x34] sm:$0xf]
        %v2580 = vld [vmem:[%s2565 + $0x38] sm:$0xf]
        %v2581 = vld [vmem:[%s2565 + $0x3c] sm:$0xf]
        %v2598 = vunpack.c.l.b16 %v2566
        %v2599 = vunpack.c.l.b16 %v2567
        %v2600 = vunpack.c.l.b16 %v2568
        %v2601 = vunpack.c.l.b16 %v2569
        %v2602 = vunpack.c.l.b16 %v2570
        %v2603 = vunpack.c.l.b16 %v2571
        %v2604 = vunpack.c.l.b16 %v2572
        %v2605 = vunpack.c.l.b16 %v2573
        %v2606 = vunpack.c.l.b16 %v2574
        %v2607 = vunpack.c.l.b16 %v2575
        %v2608 = vunpack.c.l.b16 %v2576
        %v2609 = vunpack.c.l.b16 %v2577
        %v2610 = vunpack.c.l.b16 %v2578
        %v2611 = vunpack.c.l.b16 %v2579
        %v2612 = vunpack.c.l.b16 %v2580
        %v2613 = vunpack.c.l.b16 %v2581
        %v2614 = vpack.c.b16 %v2599, %v2598
        %v2615 = vpack.c.b16 %v2601, %v2600
        %v2616 = vpack.c.b16 %v2603, %v2602
        %v2617 = vpack.c.b16 %v2605, %v2604
        %v2618 = vpack.c.b16 %v2607, %v2606
        %v2619 = vpack.c.b16 %v2609, %v2608
        %v2620 = vpack.c.b16 %v2611, %v2610
        %v2621 = vpack.c.b16 %v2613, %v2612
        %2630 = vmatprep.subr.bf16.mxu0 0
        %2631 = vmatpush1.bf16.msra.mxu0 %v2614
        %2632 = vmatprep.subr.bf16.mxu0 0
        %2633 = vmatpush1.bf16.msra.mxu0 %v2615
        %2634 = vmatprep.subr.bf16.mxu0 0
        %2635 = vmatpush1.bf16.msra.mxu0 %v2616
        %2636 = vmatprep.subr.bf16.mxu0 0
        %2637 = vmatpush1.bf16.msra.mxu0 %v2617
        %2638 = vmatprep.subr.bf16.mxu0 0
        %2639 = vmatpush1.bf16.msra.mxu0 %v2618
        %2640 = vmatprep.subr.bf16.mxu0 0
        %2641 = vmatpush1.bf16.msra.mxu0 %v2619
        %2642 = vmatprep.subr.bf16.mxu0 0
        %2643 = vmatpush1.bf16.msra.mxu0 %v2620
        %2644 = vmatprep.subr.bf16.mxu0 0
        %2645 = vmatpush1.bf16.msra.mxu0 %v2621
        %2646 = vmatprep.subr.bf16.mxu0 0
        %2647 = vmatpush1.bf16.msra.mxu0 0
        %2648 = vmatprep.subr.bf16.mxu0 0
        %2649 = vmatpush1.bf16.msra.mxu0 0
        %2650 = vmatprep.subr.bf16.mxu0 0
        %2651 = vmatpush1.bf16.msra.mxu0 0
        %2652 = vmatprep.subr.bf16.mxu0 0
        %2653 = vmatpush1.bf16.msra.mxu0 0
        %2654 = vmatprep.subr.bf16.mxu0 0
        %2655 = vmatpush1.bf16.msra.mxu0 0
        %2656 = vmatprep.subr.bf16.mxu0 0
        %2657 = vmatpush1.bf16.msra.mxu0 0
        %2658 = vmatprep.subr.bf16.mxu0 0
        %2659 = vmatpush1.bf16.msra.mxu0 0
        %2660 = vmatprep.subr.bf16.mxu0 0
        %2661 = vmatpush1.bf16.msra.mxu0 0
        %2662 = vmatprep.mubr.bf16.mxu0 0
        %2663 = vmatmul.mubr.bf16.gmra.mrb[0].mxu0 %v2564
        %v2664 = vpop.f32.mrb[0].mxu0
        %v2665 = vadd.f32 0.0, %v2664
        %v2666 = vpop.f32.mrb[0].mxu0
        %v2667 = vpop.f32.mrb[0].mxu0
        %v2668 = vpop.f32.mrb[0].mxu0
        %2669 = vdwg.mxu0
        %v2671 = vrot.slane %v2665, 1
        %v2672 = vrot.slane %v2665, 2
        %v2673 = vrot.slane %v2665, 3
        %v2674 = vrot.slane %v2665, 4
        %v2675 = vrot.slane %v2665, 5
        %v2676 = vrot.slane %v2665, 6
        %v2677 = vrot.slane %v2665, 7
        %v2686 = vadd.f32 %v403, %v2671
        %v2687 = vadd.f32 %v404, %v2672
        %v2688 = vadd.f32 %v405, %v2673
        %v2689 = vadd.f32 %v406, %v2674
        %v2690 = vadd.f32 %v407, %v2675
        %v2691 = vadd.f32 %v408, %v2676
        %v2692 = vadd.f32 %v409, %v2677
        %v2693 = vadd.f32 %v410, %v2665
        %s2694 = scalar_lea.vmem %s351, 7 [#allocation10]
        %v2695 = vld [vmem:[%s2694] sm:$0x1]
        %v2697 = vlaneseq
        %v2698 = vshrl.u32 %v2697, 7
        %v2699 = vsub.s32 0, %v2698
        %v2700 = vrot.slane %v2695, %v2699
        %v2702 = vadd.f32 %v2686, %v2700
        %v2703 = vadd.f32 %v2687, %v2700
        %v2704 = vadd.f32 %v2688, %v2700
        %v2705 = vadd.f32 %v2689, %v2700
        %v2706 = vadd.f32 %v2690, %v2700
        %v2707 = vadd.f32 %v2691, %v2700
        %v2708 = vadd.f32 %v2692, %v2700
        %v2709 = vadd.f32 %v2693, %v2700
        %2710 = vst [vmem:[%s397] sm:$0x80] %v2702
        %2711 = vst [vmem:[%s397 + $0x8] sm:$0x80] %v2703
        %2712 = vst [vmem:[%s397 + $0x10] sm:$0x80] %v2704
        %2713 = vst [vmem:[%s397 + $0x18] sm:$0x80] %v2705
        %2714 = vst [vmem:[%s397 + $0x20] sm:$0x80] %v2706
        %2715 = vst [vmem:[%s397 + $0x28] sm:$0x80] %v2707
        %2716 = vst [vmem:[%s397 + $0x30] sm:$0x80] %v2708
        %2717 = vst [vmem:[%s397 + $0x38] sm:$0x80] %v2709
        %s2718 = sand.u32 %s166, 1
        %s2719 = scalar_lea.sflag [#allocation4], %s2718
        %s2720 = sand.u32 %s166, 1
        %s2721 = smul.addr %s2720, 64
        %s2722 = scalar_lea.vmem [#allocation11], %s2721
        // Predicated region
        $region61: #{tpu_custom_call.1} parent=39 // pred_check
          %p2723 = pneg %p176
        $region62: #{tpu_custom_call.1} parent=39 // pred_check_branch
          %2725 = sbr.rel (%p2723) target = $region64
        $region63: #{tpu_custom_call.1} parent=39 // pred_region
          %s2727 = ssub.s32 1024, 1024
          %2728 = vsyncadd %s2719, %s2727
          %s2729 = smul.addr %s28, 128
          %s2730 = scalar_lea.hbm %s5, %s2729
          %s2731 = sshll.u32 %s2722, 4
          %s2732 = int_to_ptr.vmem [resolvable:$true] %s2731
          %2737 = dma.vmem_to_hbm [thread:$0]  %s2732, 1024, %s2730, %s2719, 128, 256, 8
        $region64: #{tpu_custom_call.1} parent=39 // pred_fallthru
          _
      $region40: #{tpu_custom_call.1} parent=5 // pred_fallthru
        _
      %p2738 = scmp.le.s32.totalorder 2, %s23
      // Predicated region
      $region65: #{tpu_custom_call.1} parent=5 // pred_check
        %p2739 = pneg %p2738
      $region66: #{tpu_custom_call.1} parent=5 // pred_check_branch
        %2741 = sbr.rel (%p2739) target = $region68
      $region67: #{tpu_custom_call.1} parent=5 // pred_region
        %s2742 = ssub.s32 %s23, 2
        // Predicated region
        $region69: #{tpu_custom_call.1} parent=67 // pred_check
          %p2743 = pneg %p182
        $region70: #{tpu_custom_call.1} parent=67 // pred_check_branch
          %2745 = sbr.rel (%p2743) target = $region72
        $region71: #{tpu_custom_call.1} parent=67 // pred_region
          %s2746 = sand.u32 %s167, 1
          %s2747 = scalar_lea.sflag [#allocation4], %s2746
          %s2748 = sand.u32 %s167, 1
          %s2749 = smul.addr %s2748, 64
          %s2750 = scalar_lea.vmem [#allocation11], %s2749
          %2751 = dma.done %s2747, 1024
        $region72: #{tpu_custom_call.1} parent=67 // pred_fallthru
          _
      $region68: #{tpu_custom_call.1} parent=5 // pred_fallthru
        _
    $region6: #{tpu_custom_call.1} parent=1 // loop_footer
      %s27 = sadd.s32 1, %s23
    $region7: #{tpu_custom_call.1} parent=1 // loop_footer_branch
      %22 = sbr.rel target = $region3
    $region8: #{tpu_custom_call.1} parent=1 // loop_exit
      _
    %2752 = vsyncpa [#allocation3], 1
    %s2753 = scalar_lea.sflag [#allocation3], 1
    %2754 = vsyncpa %s2753, 1
    %2755 = vsyncpa [#allocation6], 1
    %s2756 = scalar_lea.sflag [#allocation6], 1
    %2757 = vsyncpa %s2756, 1
    %2758 = vsyncpa [#allocation9], 1
    %s2759 = scalar_lea.sflag [#allocation9], 1
    %2760 = vsyncpa %s2759, 1
    %2761 = vsyncpa [#allocation4], 1
    %s2762 = scalar_lea.sflag [#allocation4], 1
    %2763 = vsyncpa %s2762, 1

</llo_original>
